<compile_context>
chip_gen: v7x
topology: tpu7x:2x2x1
jax: 0.10.0
libtpu: 0.0.40
codegen_flags: <defaults>
</compile_context>

<pallas_src>
import functools

import jax
import jax.numpy as jnp
from jax.experimental import pallas as pl
from jax.experimental.pallas import tpu as pltpu

_LANE = 128
_VMEM_LIMIT = 48 * 1024 * 1024          # fits v7x (64 MiB physical) and v5e/v6e (128 MiB)
_H_RESIDENT_BUDGET = 24 * 1024 * 1024   # budget for the (double-buffered) resident H slab


def _round_up(v, m):
    return ((v + m - 1) // m) * m


def _pad2d(x, rows, cols):
    r, c = x.shape
    if r == rows and c == cols:
        return x
    return jnp.pad(x, ((0, rows - r), (0, cols - c)))


def _pick_tile(n_pad, pref):
    """Largest multiple of 128 that is <= pref and divides n_pad (n_pad % 128 == 0)."""
    t = max(_LANE, min(pref, n_pad))
    t = (t // _LANE) * _LANE
    while n_pad % t != 0:
        t -= _LANE
    return t


# ---------------------------------------------------------------------------
# Kernel 1: fused projection.  One wide matmul against [W_l | W_r] produces
#   H = x @ W_l           (bf16, fed to the aggregation matmul)
#   S = x @ W_r + b       (f32,  added in the aggregation epilogue)
# ---------------------------------------------------------------------------
def _proj_kernel(x_ref, w_ref, b_ref, h_ref, s_ref):
    hs = jnp.dot(x_ref[...], w_ref[...], preferred_element_type=jnp.float32)
    cout = h_ref.shape[1]
    h_ref[...] = hs[:, :cout].astype(h_ref.dtype)
    s_ref[...] = (hs[:, cout:] + b_ref[...]).astype(s_ref.dtype)


def project_pallas(x, w_cat, b, *, tm=2048):
    n_pad, cin_pad = x.shape
    two_cout = w_cat.shape[1]
    cout_pad = two_cout // 2
    tm = _pick_tile(n_pad, tm)
    return pl.pallas_call(
        _proj_kernel,
        out_shape=(
            jax.ShapeDtypeStruct((n_pad, cout_pad), jnp.bfloat16),   # H
            jax.ShapeDtypeStruct((n_pad, cout_pad), jnp.float32),    # S
        ),
        grid_spec=pltpu.PrefetchScalarGridSpec(
            num_scalar_prefetch=0,
            grid=(n_pad // tm,),
            in_specs=[
                pl.BlockSpec((tm, cin_pad), lambda i: (i, 0)),
                pl.BlockSpec((cin_pad, two_cout), lambda i: (0, 0)),
                pl.BlockSpec((1, cout_pad), lambda i: (0, 0)),
            ],
            out_specs=(
                pl.BlockSpec((tm, cout_pad), lambda i: (i, 0)),
                pl.BlockSpec((tm, cout_pad), lambda i: (i, 0)),
            ),
        ),
        compiler_params=pltpu.CompilerParams(
            dimension_semantics=("parallel",),
            vmem_limit_bytes=_VMEM_LIMIT,
        ),
    )(x, w_cat, b)


# ---------------------------------------------------------------------------
# Kernel 2: tiled aggregation over the int8 0/1 adjacency with fused epilogue:
#     out[i] = (1/deg[i]) * sum_k A[i,k] @ H[k]  +  S[i]        (ReLU optional)
# grid = (row tiles "parallel", reduction tiles "arbitrary"); H VMEM-resident.
# ---------------------------------------------------------------------------
def _agg_kernel(a_ref, h_ref, s_ref, r_ref, o_ref, acc_ref, *,
                apply_relu, tk, h_resident):
    k = pl.program_id(1)

    @pl.when(k == 0)
    def _():
        acc_ref[...] = jnp.zeros_like(acc_ref)

    if h_resident:
        start = pl.multiple_of(k * tk, _LANE)
        h = h_ref[pl.ds(start, tk), :]      # slice the resident full-height H
    else:
        h = h_ref[...]                      # streamed fallback (very large N)
    acc_ref[...] += jnp.dot(
        a_ref[...].astype(jnp.bfloat16), h, preferred_element_type=jnp.float32
    )

    @pl.when(k == pl.num_programs(1) - 1)
    def _():
        out = acc_ref[...] * r_ref[...] + s_ref[...]
        if apply_relu:
            out = jnp.maximum(out, 0.0)
        o_ref[...] = out.astype(o_ref.dtype)


def sage_conv_pallas(a_i8, h, s, recip, *, apply_relu, out_dtype, tm=1024, tk=2048):
    n_pad = a_i8.shape[0]
    cout_pad = h.shape[1]
    tm = _pick_tile(n_pad, tm)
    tk = _pick_tile(n_pad, tk)

    # Keep H fully VMEM-resident (DMA'd once) unless its double-buffered footprint
    # would blow the per-chip-safe VMEM budget; then stream it per reduction tile.
    h_resident = 2 * n_pad * cout_pad * 2 <= _H_RESIDENT_BUDGET
    if h_resident:
        h_spec = pl.BlockSpec((n_pad, cout_pad), lambda i, k: (0, 0))
    else:
        h_spec = pl.BlockSpec((tk, cout_pad), lambda i, k: (k, 0))

    kernel = functools.partial(
        _agg_kernel, apply_relu=apply_relu, tk=tk, h_resident=h_resident
    )
    return pl.pallas_call(
        kernel,
        out_shape=jax.ShapeDtypeStruct((n_pad, cout_pad), out_dtype),
        grid_spec=pltpu.PrefetchScalarGridSpec(
            num_scalar_prefetch=0,
            grid=(n_pad // tm, n_pad // tk),
            in_specs=[
                pl.BlockSpec((tm, tk), lambda i, k: (i, k)),         # A (int8 0/1)
                h_spec,                                              # H = x @ W_l
                pl.BlockSpec((tm, cout_pad), lambda i, k: (i, 0)),   # S = x @ W_r + b
                pl.BlockSpec((tm, 1), lambda i, k: (i, 0)),          # 1/deg (f32)
            ],
            out_specs=pl.BlockSpec((tm, cout_pad), lambda i, k: (i, 0)),
            scratch_shapes=[pltpu.VMEM((tm, cout_pad), jnp.float32)],
        ),
        compiler_params=pltpu.CompilerParams(
            dimension_semantics=("parallel", "arbitrary"),
            vmem_limit_bytes=_VMEM_LIMIT,
        ),
    )(a_i8, h, s, recip)


# ---------------------------------------------------------------------------
# Parameters / forward
# ---------------------------------------------------------------------------
def init_sage_params(key, in_channels, hidden_channels, out_channels, num_layers):
    """Deterministic parameter init matching SAGEConv(Linear) shapes (already transposed)."""
    dims = [in_channels] + [hidden_channels] * (num_layers - 1) + [out_channels]
    params = []
    for i in range(num_layers):
        c_in, c_out = dims[i], dims[i + 1]
        key, k1, k2, k3 = jax.random.split(key, 4)
        scale = 1.0 / jnp.sqrt(jnp.float32(c_in))
        w_l = jax.random.uniform(k1, (c_in, c_out), jnp.float32, -scale, scale)
        w_r = jax.random.uniform(k2, (c_in, c_out), jnp.float32, -scale, scale)
        b = jax.random.uniform(k3, (1, c_out), jnp.float32, -scale, scale)
        params.append((w_l, w_r, b))
    return params


def sage_forward(x, adj, params, dropout=0.0, training=False,
                 *, tm=1024, tk=2048, tm_proj=2048):
    """Forward pass of the SAGE module.

    `adj` is the dense binary (0/1) adjacency without self-loops; the mean
    normalization (1/deg) is applied in f32 inside the aggregation kernel.
    Dropout is identity in eval mode (training=False), matching F.dropout semantics.
    """
    # TODO(synk): training-mode dropout not applied inside the kernels (eval semantics).
    del dropout, training
    n = x.shape[0]
    out_channels = params[-1][0].shape[1]
    n_pad = _round_up(n, _LANE)

    adj = adj.astype(jnp.float32)
    deg = jnp.sum(adj, axis=1, keepdims=True)
    recip = _pad2d((1.0 / jnp.maximum(deg, 1.0)).astype(jnp.float32), n_pad, 1)
    a_i8 = _pad2d(adj, n_pad, n_pad).astype(jnp.int8)    # exact 0/1 adjacency, half the bytes

    cur = _pad2d(x.astype(jnp.float32), n_pad,
                 _round_up(x.shape[1], _LANE)).astype(jnp.bfloat16)

    num_layers = len(params)
    for idx, (w_l, w_r, b) in enumerate(params):
        c_in, c_out = w_l.shape
        cin_pad = _round_up(c_in, _LANE)
        cout_pad = _round_up(c_out, _LANE)
        w_cat = jnp.concatenate(
            [_pad2d(w_l, cin_pad, cout_pad), _pad2d(w_r, cin_pad, cout_pad)], axis=1
        ).astype(jnp.bfloat16)
        b_p = _pad2d(b, 1, cout_pad).astype(jnp.float32)

        last = idx == num_layers - 1
        # Fused projection: [H | S] in one wide matmul, then the O(N^2) aggregation
        # runs against the lane-dense padded output-channel slab.
        h, s = project_pallas(cur, w_cat, b_p, tm=tm_proj)
        cur = sage_conv_pallas(
            a_i8, h, s, recip,
            apply_relu=not last,
            out_dtype=jnp.float32 if last else jnp.bfloat16,
            tm=tm, tk=tk,
        )
    return cur[:n, :out_channels]


def sage_forward_ref(x, a_norm, params):
    """Pure-JAX f32 reference (same math, no tiling / no low precision)."""
    h = x
    for idx, (w_l, w_r, b) in enumerate(params):
        out = a_norm @ h @ w_l + h @ w_r + b
        if idx < len(params) - 1:
            out = jnp.maximum(out, 0.0)
        h = out
    return h


def build_binary_adj(key, num_nodes, edge_prob=0.15):
    """Dense random 0/1 adjacency (no self-loops)."""
    adj = (jax.random.uniform(key, (num_nodes, num_nodes)) < edge_prob).astype(jnp.float32)
    return adj * (1.0 - jnp.eye(num_nodes, dtype=jnp.float32))


if __name__ == "__main__":
    # Small synthetic problem: 1024 nodes, in=16, hidden=32, out=8, 3 layers.
    # With tm=1024, tk=2048 (clamped to n_pad=1024) the aggregation kernel is a single
    # grid step with the whole A tile (1 MiB int8) and resident H — no per-step churn.
    num_nodes = 1024
    in_channels, hidden_channels, out_channels = 16, 32, 8
    num_layers = 3

    key = jax.random.PRNGKey(0)
    k_x, k_adj, k_p = jax.random.split(key, 3)

    x = jax.random.normal(k_x, (num_nodes, in_channels), jnp.float32)
    adj = build_binary_adj(k_adj, num_nodes)
    params = init_sage_params(k_p, in_channels, hidden_channels, out_channels, num_layers)

    out = sage_forward(x, adj, params, dropout=0.5, training=False)
    out = jax.block_until_ready(out)
    assert out.shape == (num_nodes, out_channels)

    # Correctness check vs. pure-JAX f32 reference (bf16-activation-appropriate tolerance).
    deg = jnp.sum(adj, axis=1, keepdims=True)
    a_norm = adj / jnp.maximum(deg, 1.0)
    ref = sage_forward_ref(x, a_norm, params)
    rel_err = float(jnp.max(jnp.abs(out - ref)) / (jnp.max(jnp.abs(ref)) + 1e-6))
    assert rel_err < 0.05, f"mismatch vs reference: rel-max-err={rel_err:.4f}"

    print("KERNEL_OK")
</pallas_src>

<mosaic_0001>
module attributes {stable_mosaic.version = 11 : i64} {
  func.func @_proj_kernel(%arg0: i32, %arg1: memref<1024x128xbf16, #tpu.memory_space<vmem>>, %arg2: memref<128x256xbf16, #tpu.memory_space<vmem>>, %arg3: memref<1x128xf32, #tpu.memory_space<vmem>>, %arg4: memref<1024x128xbf16, #tpu.memory_space<vmem>>, %arg5: memref<1024x128xf32, #tpu.memory_space<vmem>>) attributes {dimension_semantics = [#tpu.dimension_semantics<parallel>], iteration_bounds = array<i64: 1>, scalar_prefetch = 0 : i64, scratch_operands = 0 : i64, tpu.core_type = #tpu.core_type<tc>, window_params = [{transform_indices = @transform_0, window_bounds = array<i64: 1024, 128>}, {pipeline_mode = #tpu.pipeline_mode<synchronous>, transform_indices = @transform_1, window_bounds = array<i64: 128, 256>}, {pipeline_mode = #tpu.pipeline_mode<synchronous>, transform_indices = @transform_2, window_bounds = array<i64: 1, 128>}, {transform_indices = @transform_3, window_bounds = array<i64: 1024, 128>}, {transform_indices = @transform_4, window_bounds = array<i64: 1024, 128>}]} {
    %c0 = arith.constant 0 : index
    %c0_0 = arith.constant 0 : index
    %0 = vector.load %arg1[%c0, %c0_0] : memref<1024x128xbf16, #tpu.memory_space<vmem>>, vector<1024x128xbf16>
    %c0_1 = arith.constant 0 : index
    %c0_2 = arith.constant 0 : index
    %1 = vector.load %arg2[%c0_1, %c0_2] : memref<128x256xbf16, #tpu.memory_space<vmem>>, vector<128x256xbf16>
    %cst = arith.constant dense<0.000000e+00> : vector<1024x256xf32>
    %2 = tpu.matmul %0, %1, %cst {dimension_numbers = #tpu.dot_dimension_numbers<[1], [0], [0], [1], [0, 0, 1, 1], [], []>} : vector<1024x128xbf16>, vector<128x256xbf16>, vector<1024x256xf32> -> vector<1024x256xf32>
    %3 = vector.extract_strided_slice %2 {offsets = [0, 0], sizes = [1024, 128], strides = [1, 1]} : vector<1024x256xf32> to vector<1024x128xf32>
    %4 = arith.truncf %3 : vector<1024x128xf32> to vector<1024x128xbf16>
    %c0_3 = arith.constant 0 : index
    %c0_4 = arith.constant 0 : index
    %5 = vector.load %arg4[%c0_3, %c0_4] : memref<1024x128xbf16, #tpu.memory_space<vmem>>, vector<1024x128xbf16>
    tpu.vector_store %arg4[%c0_3, %c0_4], %4 {strides = array<i32>} : memref<1024x128xbf16, #tpu.memory_space<vmem>>, vector<1024x128xbf16>,
    %6 = vector.extract_strided_slice %2 {offsets = [0, 128], sizes = [1024, 128], strides = [1, 1]} : vector<1024x256xf32> to vector<1024x128xf32>
    %c0_5 = arith.constant 0 : index
    %c0_6 = arith.constant 0 : index
    %7 = vector.load %arg3[%c0_5, %c0_6] : memref<1x128xf32, #tpu.memory_space<vmem>>, vector<1x128xf32>
    %8 = vector.broadcast %7 : vector<1x128xf32> to vector<1024x128xf32>
    %9 = arith.addf %6, %8 : vector<1024x128xf32>
    %c0_7 = arith.constant 0 : index
    %c0_8 = arith.constant 0 : index
    %10 = vector.load %arg5[%c0_7, %c0_8] : memref<1024x128xf32, #tpu.memory_space<vmem>>, vector<1024x128xf32>
    tpu.vector_store %arg5[%c0_7, %c0_8], %9 {strides = array<i32>} : memref<1024x128xf32, #tpu.memory_space<vmem>>, vector<1024x128xf32>,
    return
  }
  func.func @transform_0(%arg0: i32) -> (i32, i32) {
    %c0_i32 = arith.constant 0 : i32
    %c0_i32_0 = arith.constant 0 : i32
    return %arg0, %c0_i32 : i32, i32
  }
  func.func @transform_1(%arg0: i32) -> (i32, i32) {
    %c0_i32 = arith.constant 0 : i32
    %c0_i32_0 = arith.constant 0 : i32
    %c0_i32_1 = arith.constant 0 : i32
    return %c0_i32, %c0_i32_0 : i32, i32
  }
  func.func @transform_2(%arg0: i32) -> (i32, i32) {
    %c0_i32 = arith.constant 0 : i32
    %c0_i32_0 = arith.constant 0 : i32
    %c0_i32_1 = arith.constant 0 : i32
    return %c0_i32, %c0_i32_0 : i32, i32
  }
  func.func @transform_3(%arg0: i32) -> (i32, i32) {
    %c0_i32 = arith.constant 0 : i32
    %c0_i32_0 = arith.constant 0 : i32
    return %arg0, %c0_i32 : i32, i32
  }
  func.func @transform_4(%arg0: i32) -> (i32, i32) {
    %c0_i32 = arith.constant 0 : i32
    %c0_i32_0 = arith.constant 0 : i32
    return %arg0, %c0_i32 : i32, i32
  }
}

</mosaic_0001>

<llo_original>
// kernel: tpu_custom_call.1
$region0: #{tpu_custom_call.1}
  #allocation0 [shape = 'u32[]', space=smem, size = 0x4, offset = 0x4, fixed_abs, tag = 'smem constant byte address 0x4 - core index']
  #allocation1 [shape = 'u32[144,128]{1,0:T(1,128)}', space=vmem, size = 0x12000, scoped, tag = 'internal scratch']
  %s0 = inlined_call_operand.hbm [shape: bf16[1024,128], index: 0, kind: input, shape index: {}]
  %s1 = inlined_call_operand.hbm [shape: bf16[128,256], index: 1, kind: input, shape index: {}]
  %s2 = inlined_call_operand.vmem [shape: f32[1,128], index: 2, kind: input, shape index: {}]
  %s3 = inlined_call_operand.hbm [shape: bf16[1024,128], index: 3, kind: output, shape index: {0}]
  %s4 = inlined_call_operand.hbm [shape: f32[1024,128], index: 4, kind: output, shape index: {1}]
  %5 = xla_tuple %s3, %s4
  %s6 = sld [smem:[#allocation0]]
  $region38: #{tpu_custom_call.1} parent=0
    _
  %s8 = ssub.s32 1, %s6
  %s9 = scalar_select 0, %s8, %s6
  $region1: #{tpu_custom_call.1} parent=0
    #allocation2 [shape = 'u8[262144]{0}', space=vmem, size = 0x40000, scoped, tag = 'input window, operand 0, single buffered']
    #allocation3 [shape = 's32[1]{0}', space=sflag, size = 0x4, scoped, tag = 'scoped memory for tpu_custom_call.1']
    #allocation4 [shape = 's32[1]{0}', space=sflag, size = 0x4, scoped, tag = 'scoped memory for tpu_custom_call.1']
    #allocation5 [shape = 'u8[65536]{0}', space=vmem, size = 0x10000, scoped, tag = 'input window, operand 1, single buffered']
    #allocation6 [shape = 's32[1]{0}', space=sflag, size = 0x4, scoped, tag = 'scoped memory for tpu_custom_call.1']
    #allocation7 [shape = 'u8[262144]{0}', space=vmem, size = 0x40000, scoped, tag = 'output window, operand 0, single buffered']
    #allocation8 [shape = 'u8[524288]{0}', space=vmem, size = 0x80000, scoped, tag = 'output window, operand 1, single buffered']
    #allocation9 [shape = 's32[1]{0}', space=sflag, size = 0x4, scoped, tag = 'scoped memory for tpu_custom_call.1']
    %10 = vsyncpa [#allocation3], 0
    %11 = vsyncpa [#allocation6], 0
    %12 = vsyncpa [#allocation4], 0
    %13 = vsyncpa [#allocation9], 0
    // Predicated region
    $region2: #{tpu_custom_call.1} parent=1 // pred_check
      _
    $region3: #{tpu_custom_call.1} parent=1 // pred_check_branch
      %15 = sbr.rel (0) target = $region5
    $region4: #{tpu_custom_call.1} parent=1 // pred_region
      %s17 = ssub.s32 8192, 8192
      %18 = vsyncadd [#allocation3], %s17
      %s19 = sshll.u32 [#allocation2], 4
      %s20 = int_to_ptr.vmem [resolvable:$true] %s19
      %25 = dma.hbm_to_vmem [thread:$0]  %s0, 8192, %s20, [#allocation3], 64, 64, 4
    $region5: #{tpu_custom_call.1} parent=1 // pred_fallthru
      _
    // Predicated region
    $region6: #{tpu_custom_call.1} parent=1 // pred_check
      _
    $region7: #{tpu_custom_call.1} parent=1 // pred_check_branch
      %27 = sbr.rel (0) target = $region9
    $region8: #{tpu_custom_call.1} parent=1 // pred_region
      %s29 = ssub.s32 2048, 2048
      %30 = vsyncadd [#allocation6], %s29
      %s31 = sshll.u32 [#allocation5], 4
      %s32 = int_to_ptr.vmem [resolvable:$true] %s31
      %37 = dma.hbm_to_vmem [thread:$0]  %s1, 2048, %s32, [#allocation6], 128, 128, 8
    $region9: #{tpu_custom_call.1} parent=1 // pred_fallthru
      _
    // Predicated region
    $region10: #{tpu_custom_call.1} parent=1 // pred_check
      _
    $region11: #{tpu_custom_call.1} parent=1 // pred_check_branch
      %39 = sbr.rel (0) target = $region13
    $region12: #{tpu_custom_call.1} parent=1 // pred_region
      _
    $region13: #{tpu_custom_call.1} parent=1 // pred_fallthru
      _
    // Predicated region
    $region14: #{tpu_custom_call.1} parent=1 // pred_check
      _
    $region15: #{tpu_custom_call.1} parent=1 // pred_check_branch
      %41 = sbr.rel (0) target = $region17
    $region16: #{tpu_custom_call.1} parent=1 // pred_region
      %42 = dma.done [#allocation3], 8192
    $region17: #{tpu_custom_call.1} parent=1 // pred_fallthru
      _
    // Predicated region
    $region18: #{tpu_custom_call.1} parent=1 // pred_check
      _
    $region19: #{tpu_custom_call.1} parent=1 // pred_check_branch
      %44 = sbr.rel (0) target = $region21
    $region20: #{tpu_custom_call.1} parent=1 // pred_region
      %45 = dma.done [#allocation6], 2048
    $region21: #{tpu_custom_call.1} parent=1 // pred_fallthru
      _
    %v47 = vld [vmem:[#allocation2] sm:$0xf]
    %v48 = vld [vmem:[#allocation2 + $0x4] sm:$0xf]
    %v49 = vld [vmem:[#allocation2 + $0x8] sm:$0xf]
    %v50 = vld [vmem:[#allocation2 + $0xc] sm:$0xf]
    %v51 = vld [vmem:[#allocation2 + $0x10] sm:$0xf]
    %v52 = vld [vmem:[#allocation2 + $0x14] sm:$0xf]
    %v53 = vld [vmem:[#allocation2 + $0x18] sm:$0xf]
    %v54 = vld [vmem:[#allocation2 + $0x1c] sm:$0xf]
    %v55 = vld [vmem:[#allocation2 + $0x20] sm:$0xf]
    %v56 = vld [vmem:[#allocation2 + $0x24] sm:$0xf]
    %v57 = vld [vmem:[#allocation2 + $0x28] sm:$0xf]
    %v58 = vld [vmem:[#allocation2 + $0x2c] sm:$0xf]
    %v59 = vld [vmem:[#allocation2 + $0x30] sm:$0xf]
    %v60 = vld [vmem:[#allocation2 + $0x34] sm:$0xf]
    %v61 = vld [vmem:[#allocation2 + $0x38] sm:$0xf]
    %v62 = vld [vmem:[#allocation2 + $0x3c] sm:$0xf]
    %v63 = vld [vmem:[#allocation2 + $0x40] sm:$0xf]
    %v64 = vld [vmem:[#allocation2 + $0x44] sm:$0xf]
    %v65 = vld [vmem:[#allocation2 + $0x48] sm:$0xf]
    %v66 = vld [vmem:[#allocation2 + $0x4c] sm:$0xf]
    %v67 = vld [vmem:[#allocation2 + $0x50] sm:$0xf]
    %v68 = vld [vmem:[#allocation2 + $0x54] sm:$0xf]
    %v69 = vld [vmem:[#allocation2 + $0x58] sm:$0xf]
    %v70 = vld [vmem:[#allocation2 + $0x5c] sm:$0xf]
    %v71 = vld [vmem:[#allocation2 + $0x60] sm:$0xf]
    %v72 = vld [vmem:[#allocation2 + $0x64] sm:$0xf]
    %v73 = vld [vmem:[#allocation2 + $0x68] sm:$0xf]
    %v74 = vld [vmem:[#allocation2 + $0x6c] sm:$0xf]
    %v75 = vld [vmem:[#allocation2 + $0x70] sm:$0xf]
    %v76 = vld [vmem:[#allocation2 + $0x74] sm:$0xf]
    %v77 = vld [vmem:[#allocation2 + $0x78] sm:$0xf]
    %v78 = vld [vmem:[#allocation2 + $0x7c] sm:$0xf]
    %v79 = vld [vmem:[#allocation2 + $0x80] sm:$0xf]
    %v80 = vld [vmem:[#allocation2 + $0x84] sm:$0xf]
    %v81 = vld [vmem:[#allocation2 + $0x88] sm:$0xf]
    %v82 = vld [vmem:[#allocation2 + $0x8c] sm:$0xf]
    %v83 = vld [vmem:[#allocation2 + $0x90] sm:$0xf]
    %v84 = vld [vmem:[#allocation2 + $0x94] sm:$0xf]
    %v85 = vld [vmem:[#allocation2 + $0x98] sm:$0xf]
    %v86 = vld [vmem:[#allocation2 + $0x9c] sm:$0xf]
    %v87 = vld [vmem:[#allocation2 + $0xa0] sm:$0xf]
    %v88 = vld [vmem:[#allocation2 + $0xa4] sm:$0xf]
    %v89 = vld [vmem:[#allocation2 + $0xa8] sm:$0xf]
    %v90 = vld [vmem:[#allocation2 + $0xac] sm:$0xf]
    %v91 = vld [vmem:[#allocation2 + $0xb0] sm:$0xf]
    %v92 = vld [vmem:[#allocation2 + $0xb4] sm:$0xf]
    %v93 = vld [vmem:[#allocation2 + $0xb8] sm:$0xf]
    %v94 = vld [vmem:[#allocation2 + $0xbc] sm:$0xf]
    %v95 = vld [vmem:[#allocation2 + $0xc0] sm:$0xf]
    %v96 = vld [vmem:[#allocation2 + $0xc4] sm:$0xf]
    %v97 = vld [vmem:[#allocation2 + $0xc8] sm:$0xf]
    %v98 = vld [vmem:[#allocation2 + $0xcc] sm:$0xf]
    %v99 = vld [vmem:[#allocation2 + $0xd0] sm:$0xf]
    %v100 = vld [vmem:[#allocation2 + $0xd4] sm:$0xf]
    %v101 = vld [vmem:[#allocation2 + $0xd8] sm:$0xf]
    %v102 = vld [vmem:[#allocation2 + $0xdc] sm:$0xf]
    %v103 = vld [vmem:[#allocation2 + $0xe0] sm:$0xf]
    %v104 = vld [vmem:[#allocation2 + $0xe4] sm:$0xf]
    %v105 = vld [vmem:[#allocation2 + $0xe8] sm:$0xf]
    %v106 = vld [vmem:[#allocation2 + $0xec] sm:$0xf]
    %v107 = vld [vmem:[#allocation2 + $0xf0] sm:$0xf]
    %v108 = vld [vmem:[#allocation2 + $0xf4] sm:$0xf]
    %v109 = vld [vmem:[#allocation2 + $0xf8] sm:$0xf]
    %v110 = vld [vmem:[#allocation2 + $0xfc] sm:$0xf]
    %v111 = vld [vmem:[#allocation2 + $0x100] sm:$0xf]
    %v112 = vld [vmem:[#allocation2 + $0x104] sm:$0xf]
    %v113 = vld [vmem:[#allocation2 + $0x108] sm:$0xf]
    %v114 = vld [vmem:[#allocation2 + $0x10c] sm:$0xf]
    %v115 = vld [vmem:[#allocation2 + $0x110] sm:$0xf]
    %v116 = vld [vmem:[#allocation2 + $0x114] sm:$0xf]
    %v117 = vld [vmem:[#allocation2 + $0x118] sm:$0xf]
    %v118 = vld [vmem:[#allocation2 + $0x11c] sm:$0xf]
    %v119 = vld [vmem:[#allocation2 + $0x120] sm:$0xf]
    %v120 = vld [vmem:[#allocation2 + $0x124] sm:$0xf]
    %v121 = vld [vmem:[#allocation2 + $0x128] sm:$0xf]
    %v122 = vld [vmem:[#allocation2 + $0x12c] sm:$0xf]
    %v123 = vld [vmem:[#allocation2 + $0x130] sm:$0xf]
    %v124 = vld [vmem:[#allocation2 + $0x134] sm:$0xf]
    %v125 = vld [vmem:[#allocation2 + $0x138] sm:$0xf]
    %v126 = vld [vmem:[#allocation2 + $0x13c] sm:$0xf]
    %v127 = vld [vmem:[#allocation2 + $0x140] sm:$0xf]
    %v128 = vld [vmem:[#allocation2 + $0x144] sm:$0xf]
    %v129 = vld [vmem:[#allocation2 + $0x148] sm:$0xf]
    %v130 = vld [vmem:[#allocation2 + $0x14c] sm:$0xf]
    %v131 = vld [vmem:[#allocation2 + $0x150] sm:$0xf]
    %v132 = vld [vmem:[#allocation2 + $0x154] sm:$0xf]
    %v133 = vld [vmem:[#allocation2 + $0x158] sm:$0xf]
    %v134 = vld [vmem:[#allocation2 + $0x15c] sm:$0xf]
    %v135 = vld [vmem:[#allocation2 + $0x160] sm:$0xf]
    %v136 = vld [vmem:[#allocation2 + $0x164] sm:$0xf]
    %v137 = vld [vmem:[#allocation2 + $0x168] sm:$0xf]
    %v138 = vld [vmem:[#allocation2 + $0x16c] sm:$0xf]
    %v139 = vld [vmem:[#allocation2 + $0x170] sm:$0xf]
    %v140 = vld [vmem:[#allocation2 + $0x174] sm:$0xf]
    %v141 = vld [vmem:[#allocation2 + $0x178] sm:$0xf]
    %v142 = vld [vmem:[#allocation2 + $0x17c] sm:$0xf]
    %v143 = vld [vmem:[#allocation2 + $0x180] sm:$0xf]
    %v144 = vld [vmem:[#allocation2 + $0x184] sm:$0xf]
    %v145 = vld [vmem:[#allocation2 + $0x188] sm:$0xf]
    %v146 = vld [vmem:[#allocation2 + $0x18c] sm:$0xf]
    %v147 = vld [vmem:[#allocation2 + $0x190] sm:$0xf]
    %v148 = vld [vmem:[#allocation2 + $0x194] sm:$0xf]
    %v149 = vld [vmem:[#allocation2 + $0x198] sm:$0xf]
    %v150 = vld [vmem:[#allocation2 + $0x19c] sm:$0xf]
    %v151 = vld [vmem:[#allocation2 + $0x1a0] sm:$0xf]
    %v152 = vld [vmem:[#allocation2 + $0x1a4] sm:$0xf]
    %v153 = vld [vmem:[#allocation2 + $0x1a8] sm:$0xf]
    %v154 = vld [vmem:[#allocation2 + $0x1ac] sm:$0xf]
    %v155 = vld [vmem:[#allocation2 + $0x1b0] sm:$0xf]
    %v156 = vld [vmem:[#allocation2 + $0x1b4] sm:$0xf]
    %v157 = vld [vmem:[#allocation2 + $0x1b8] sm:$0xf]
    %v158 = vld [vmem:[#allocation2 + $0x1bc] sm:$0xf]
    %v159 = vld [vmem:[#allocation2 + $0x1c0] sm:$0xf]
    %v160 = vld [vmem:[#allocation2 + $0x1c4] sm:$0xf]
    %v161 = vld [vmem:[#allocation2 + $0x1c8] sm:$0xf]
    %v162 = vld [vmem:[#allocation2 + $0x1cc] sm:$0xf]
    %v163 = vld [vmem:[#allocation2 + $0x1d0] sm:$0xf]
    %v164 = vld [vmem:[#allocation2 + $0x1d4] sm:$0xf]
    %v165 = vld [vmem:[#allocation2 + $0x1d8] sm:$0xf]
    %v166 = vld [vmem:[#allocation2 + $0x1dc] sm:$0xf]
    %v167 = vld [vmem:[#allocation2 + $0x1e0] sm:$0xf]
    %v168 = vld [vmem:[#allocation2 + $0x1e4] sm:$0xf]
    %v169 = vld [vmem:[#allocation2 + $0x1e8] sm:$0xf]
    %v170 = vld [vmem:[#allocation2 + $0x1ec] sm:$0xf]
    %v171 = vld [vmem:[#allocation2 + $0x1f0] sm:$0xf]
    %v172 = vld [vmem:[#allocation2 + $0x1f4] sm:$0xf]
    %v173 = vld [vmem:[#allocation2 + $0x1f8] sm:$0xf]
    %v174 = vld [vmem:[#allocation2 + $0x1fc] sm:$0xf]
    %v175 = vld [vmem:[#allocation5] sm:$0xff]
    %v176 = vld [vmem:[#allocation5 + $0x8] sm:$0xff]
    %v177 = vld [vmem:[#allocation5 + $0x10] sm:$0xff]
    %v178 = vld [vmem:[#allocation5 + $0x18] sm:$0xff]
    %v179 = vld [vmem:[#allocation5 + $0x20] sm:$0xff]
    %v180 = vld [vmem:[#allocation5 + $0x28] sm:$0xff]
    %v181 = vld [vmem:[#allocation5 + $0x30] sm:$0xff]
    %v182 = vld [vmem:[#allocation5 + $0x38] sm:$0xff]
    %v183 = vld [vmem:[#allocation5 + $0x40] sm:$0xff]
    %v184 = vld [vmem:[#allocation5 + $0x48] sm:$0xff]
    %v185 = vld [vmem:[#allocation5 + $0x50] sm:$0xff]
    %v186 = vld [vmem:[#allocation5 + $0x58] sm:$0xff]
    %v187 = vld [vmem:[#allocation5 + $0x60] sm:$0xff]
    %v188 = vld [vmem:[#allocation5 + $0x68] sm:$0xff]
    %v189 = vld [vmem:[#allocation5 + $0x70] sm:$0xff]
    %v190 = vld [vmem:[#allocation5 + $0x78] sm:$0xff]
    %v319 = vunpack.c.l.b16 %v47
    %v320 = vunpack.c.l.b16 %v48
    %v321 = vunpack.c.l.b16 %v49
    %v322 = vunpack.c.l.b16 %v50
    %v323 = vunpack.c.l.b16 %v51
    %v324 = vunpack.c.l.b16 %v52
    %v325 = vunpack.c.l.b16 %v53
    %v326 = vunpack.c.l.b16 %v54
    %v327 = vunpack.c.l.b16 %v55
    %v328 = vunpack.c.l.b16 %v56
    %v329 = vunpack.c.l.b16 %v57
    %v330 = vunpack.c.l.b16 %v58
    %v331 = vunpack.c.l.b16 %v59
    %v332 = vunpack.c.l.b16 %v60
    %v333 = vunpack.c.l.b16 %v61
    %v334 = vunpack.c.l.b16 %v62
    %v335 = vunpack.c.l.b16 %v63
    %v336 = vunpack.c.l.b16 %v64
    %v337 = vunpack.c.l.b16 %v65
    %v338 = vunpack.c.l.b16 %v66
    %v339 = vunpack.c.l.b16 %v67
    %v340 = vunpack.c.l.b16 %v68
    %v341 = vunpack.c.l.b16 %v69
    %v342 = vunpack.c.l.b16 %v70
    %v343 = vunpack.c.l.b16 %v71
    %v344 = vunpack.c.l.b16 %v72
    %v345 = vunpack.c.l.b16 %v73
    %v346 = vunpack.c.l.b16 %v74
    %v347 = vunpack.c.l.b16 %v75
    %v348 = vunpack.c.l.b16 %v76
    %v349 = vunpack.c.l.b16 %v77
    %v350 = vunpack.c.l.b16 %v78
    %v351 = vunpack.c.l.b16 %v79
    %v352 = vunpack.c.l.b16 %v80
    %v353 = vunpack.c.l.b16 %v81
    %v354 = vunpack.c.l.b16 %v82
    %v355 = vunpack.c.l.b16 %v83
    %v356 = vunpack.c.l.b16 %v84
    %v357 = vunpack.c.l.b16 %v85
    %v358 = vunpack.c.l.b16 %v86
    %v359 = vunpack.c.l.b16 %v87
    %v360 = vunpack.c.l.b16 %v88
    %v361 = vunpack.c.l.b16 %v89
    %v362 = vunpack.c.l.b16 %v90
    %v363 = vunpack.c.l.b16 %v91
    %v364 = vunpack.c.l.b16 %v92
    %v365 = vunpack.c.l.b16 %v93
    %v366 = vunpack.c.l.b16 %v94
    %v367 = vunpack.c.l.b16 %v95
    %v368 = vunpack.c.l.b16 %v96
    %v369 = vunpack.c.l.b16 %v97
    %v370 = vunpack.c.l.b16 %v98
    %v371 = vunpack.c.l.b16 %v99
    %v372 = vunpack.c.l.b16 %v100
    %v373 = vunpack.c.l.b16 %v101
    %v374 = vunpack.c.l.b16 %v102
    %v375 = vunpack.c.l.b16 %v103
    %v376 = vunpack.c.l.b16 %v104
    %v377 = vunpack.c.l.b16 %v105
    %v378 = vunpack.c.l.b16 %v106
    %v379 = vunpack.c.l.b16 %v107
    %v380 = vunpack.c.l.b16 %v108
    %v381 = vunpack.c.l.b16 %v109
    %v382 = vunpack.c.l.b16 %v110
    %v383 = vunpack.c.l.b16 %v111
    %v384 = vunpack.c.l.b16 %v112
    %v385 = vunpack.c.l.b16 %v113
    %v386 = vunpack.c.l.b16 %v114
    %v387 = vunpack.c.l.b16 %v115
    %v388 = vunpack.c.l.b16 %v116
    %v389 = vunpack.c.l.b16 %v117
    %v390 = vunpack.c.l.b16 %v118
    %v391 = vunpack.c.l.b16 %v119
    %v392 = vunpack.c.l.b16 %v120
    %v393 = vunpack.c.l.b16 %v121
    %v394 = vunpack.c.l.b16 %v122
    %v395 = vunpack.c.l.b16 %v123
    %v396 = vunpack.c.l.b16 %v124
    %v397 = vunpack.c.l.b16 %v125
    %v398 = vunpack.c.l.b16 %v126
    %v399 = vunpack.c.l.b16 %v127
    %v400 = vunpack.c.l.b16 %v128
    %v401 = vunpack.c.l.b16 %v129
    %v402 = vunpack.c.l.b16 %v130
    %v403 = vunpack.c.l.b16 %v131
    %v404 = vunpack.c.l.b16 %v132
    %v405 = vunpack.c.l.b16 %v133
    %v406 = vunpack.c.l.b16 %v134
    %v407 = vunpack.c.l.b16 %v135
    %v408 = vunpack.c.l.b16 %v136
    %v409 = vunpack.c.l.b16 %v137
    %v410 = vunpack.c.l.b16 %v138
    %v411 = vunpack.c.l.b16 %v139
    %v412 = vunpack.c.l.b16 %v140
    %v413 = vunpack.c.l.b16 %v141
    %v414 = vunpack.c.l.b16 %v142
    %v415 = vunpack.c.l.b16 %v143
    %v416 = vunpack.c.l.b16 %v144
    %v417 = vunpack.c.l.b16 %v145
    %v418 = vunpack.c.l.b16 %v146
    %v419 = vunpack.c.l.b16 %v147
    %v420 = vunpack.c.l.b16 %v148
    %v421 = vunpack.c.l.b16 %v149
    %v422 = vunpack.c.l.b16 %v150
    %v423 = vunpack.c.l.b16 %v151
    %v424 = vunpack.c.l.b16 %v152
    %v425 = vunpack.c.l.b16 %v153
    %v426 = vunpack.c.l.b16 %v154
    %v427 = vunpack.c.l.b16 %v155
    %v428 = vunpack.c.l.b16 %v156
    %v429 = vunpack.c.l.b16 %v157
    %v430 = vunpack.c.l.b16 %v158
    %v431 = vunpack.c.l.b16 %v159
    %v432 = vunpack.c.l.b16 %v160
    %v433 = vunpack.c.l.b16 %v161
    %v434 = vunpack.c.l.b16 %v162
    %v435 = vunpack.c.l.b16 %v163
    %v436 = vunpack.c.l.b16 %v164
    %v437 = vunpack.c.l.b16 %v165
    %v438 = vunpack.c.l.b16 %v166
    %v439 = vunpack.c.l.b16 %v167
    %v440 = vunpack.c.l.b16 %v168
    %v441 = vunpack.c.l.b16 %v169
    %v442 = vunpack.c.l.b16 %v170
    %v443 = vunpack.c.l.b16 %v171
    %v444 = vunpack.c.l.b16 %v172
    %v445 = vunpack.c.l.b16 %v173
    %v446 = vunpack.c.l.b16 %v174
    %v447 = vpack.c.b16 %v320, %v319
    %v448 = vpack.c.b16 %v322, %v321
    %v449 = vpack.c.b16 %v324, %v323
    %v450 = vpack.c.b16 %v326, %v325
    %v451 = vpack.c.b16 %v328, %v327
    %v452 = vpack.c.b16 %v330, %v329
    %v453 = vpack.c.b16 %v332, %v331
    %v454 = vpack.c.b16 %v334, %v333
    %v455 = vpack.c.b16 %v336, %v335
    %v456 = vpack.c.b16 %v338, %v337
    %v457 = vpack.c.b16 %v340, %v339
    %v458 = vpack.c.b16 %v342, %v341
    %v459 = vpack.c.b16 %v344, %v343
    %v460 = vpack.c.b16 %v346, %v345
    %v461 = vpack.c.b16 %v348, %v347
    %v462 = vpack.c.b16 %v350, %v349
    %v463 = vpack.c.b16 %v352, %v351
    %v464 = vpack.c.b16 %v354, %v353
    %v465 = vpack.c.b16 %v356, %v355
    %v466 = vpack.c.b16 %v358, %v357
    %v467 = vpack.c.b16 %v360, %v359
    %v468 = vpack.c.b16 %v362, %v361
    %v469 = vpack.c.b16 %v364, %v363
    %v470 = vpack.c.b16 %v366, %v365
    %v471 = vpack.c.b16 %v368, %v367
    %v472 = vpack.c.b16 %v370, %v369
    %v473 = vpack.c.b16 %v372, %v371
    %v474 = vpack.c.b16 %v374, %v373
    %v475 = vpack.c.b16 %v376, %v375
    %v476 = vpack.c.b16 %v378, %v377
    %v477 = vpack.c.b16 %v380, %v379
    %v478 = vpack.c.b16 %v382, %v381
    %v479 = vpack.c.b16 %v384, %v383
    %v480 = vpack.c.b16 %v386, %v385
    %v481 = vpack.c.b16 %v388, %v387
    %v482 = vpack.c.b16 %v390, %v389
    %v483 = vpack.c.b16 %v392, %v391
    %v484 = vpack.c.b16 %v394, %v393
    %v485 = vpack.c.b16 %v396, %v395
    %v486 = vpack.c.b16 %v398, %v397
    %v487 = vpack.c.b16 %v400, %v399
    %v488 = vpack.c.b16 %v402, %v401
    %v489 = vpack.c.b16 %v404, %v403
    %v490 = vpack.c.b16 %v406, %v405
    %v491 = vpack.c.b16 %v408, %v407
    %v492 = vpack.c.b16 %v410, %v409
    %v493 = vpack.c.b16 %v412, %v411
    %v494 = vpack.c.b16 %v414, %v413
    %v495 = vpack.c.b16 %v416, %v415
    %v496 = vpack.c.b16 %v418, %v417
    %v497 = vpack.c.b16 %v420, %v419
    %v498 = vpack.c.b16 %v422, %v421
    %v499 = vpack.c.b16 %v424, %v423
    %v500 = vpack.c.b16 %v426, %v425
    %v501 = vpack.c.b16 %v428, %v427
    %v502 = vpack.c.b16 %v430, %v429
    %v503 = vpack.c.b16 %v432, %v431
    %v504 = vpack.c.b16 %v434, %v433
    %v505 = vpack.c.b16 %v436, %v435
    %v506 = vpack.c.b16 %v438, %v437
    %v507 = vpack.c.b16 %v440, %v439
    %v508 = vpack.c.b16 %v442, %v441
    %v509 = vpack.c.b16 %v444, %v443
    %v510 = vpack.c.b16 %v446, %v445
    %v591 = vunpack.c.l.b16 %v175
    %v592 = vunpack.c.h.b16 %v175
    %v593 = vunpack.c.l.b16 %v176
    %v594 = vunpack.c.h.b16 %v176
    %v595 = vunpack.c.l.b16 %v177
    %v596 = vunpack.c.h.b16 %v177
    %v597 = vunpack.c.l.b16 %v178
    %v598 = vunpack.c.h.b16 %v178
    %v599 = vunpack.c.l.b16 %v179
    %v600 = vunpack.c.h.b16 %v179
    %v601 = vunpack.c.l.b16 %v180
    %v602 = vunpack.c.h.b16 %v180
    %v603 = vunpack.c.l.b16 %v181
    %v604 = vunpack.c.h.b16 %v181
    %v605 = vunpack.c.l.b16 %v182
    %v606 = vunpack.c.h.b16 %v182
    %v607 = vunpack.c.l.b16 %v183
    %v608 = vunpack.c.h.b16 %v183
    %v609 = vunpack.c.l.b16 %v184
    %v610 = vunpack.c.h.b16 %v184
    %v611 = vunpack.c.l.b16 %v185
    %v612 = vunpack.c.h.b16 %v185
    %v613 = vunpack.c.l.b16 %v186
    %v614 = vunpack.c.h.b16 %v186
    %v615 = vunpack.c.l.b16 %v187
    %v616 = vunpack.c.h.b16 %v187
    %v617 = vunpack.c.l.b16 %v188
    %v618 = vunpack.c.h.b16 %v188
    %v619 = vunpack.c.l.b16 %v189
    %v620 = vunpack.c.h.b16 %v189
    %v621 = vunpack.c.l.b16 %v190
    %v622 = vunpack.c.h.b16 %v190
    %v623 = vpack.c.b16 %v593, %v591
    %v624 = vpack.c.b16 %v594, %v592
    %v625 = vpack.c.b16 %v597, %v595
    %v626 = vpack.c.b16 %v598, %v596
    %v627 = vpack.c.b16 %v601, %v599
    %v628 = vpack.c.b16 %v602, %v600
    %v629 = vpack.c.b16 %v605, %v603
    %v630 = vpack.c.b16 %v606, %v604
    %v631 = vpack.c.b16 %v609, %v607
    %v632 = vpack.c.b16 %v610, %v608
    %v633 = vpack.c.b16 %v613, %v611
    %v634 = vpack.c.b16 %v614, %v612
    %v635 = vpack.c.b16 %v617, %v615
    %v636 = vpack.c.b16 %v618, %v616
    %v637 = vpack.c.b16 %v621, %v619
    %v638 = vpack.c.b16 %v622, %v620
    %655 = vmatprep.subr.bf16.mxu0 %v624
    %656 = vmatpush1.bf16.msra.mxu0 %v623
    %657 = vmatprep.subr.bf16.mxu0 %v626
    %658 = vmatpush1.bf16.msra.mxu0 %v625
    %659 = vmatprep.subr.bf16.mxu0 %v628
    %660 = vmatpush1.bf16.msra.mxu0 %v627
    %661 = vmatprep.subr.bf16.mxu0 %v630
    %662 = vmatpush1.bf16.msra.mxu0 %v629
    %663 = vmatprep.subr.bf16.mxu0 %v632
    %664 = vmatpush1.bf16.msra.mxu0 %v631
    %665 = vmatprep.subr.bf16.mxu0 %v634
    %666 = vmatpush1.bf16.msra.mxu0 %v633
    %667 = vmatprep.subr.bf16.mxu0 %v636
    %668 = vmatpush1.bf16.msra.mxu0 %v635
    %669 = vmatprep.subr.bf16.mxu0 %v638
    %670 = vmatpush1.bf16.msra.mxu0 %v637
    %671 = vmatprep.subr.bf16.mxu0 0
    %672 = vmatpush1.bf16.msra.mxu0 0
    %673 = vmatprep.subr.bf16.mxu0 0
    %674 = vmatpush1.bf16.msra.mxu0 0
    %675 = vmatprep.subr.bf16.mxu0 0
    %676 = vmatpush1.bf16.msra.mxu0 0
    %677 = vmatprep.subr.bf16.mxu0 0
    %678 = vmatpush1.bf16.msra.mxu0 0
    %679 = vmatprep.subr.bf16.mxu0 0
    %680 = vmatpush1.bf16.msra.mxu0 0
    %681 = vmatprep.subr.bf16.mxu0 0
    %682 = vmatpush1.bf16.msra.mxu0 0
    %683 = vmatprep.subr.bf16.mxu0 0
    %684 = vmatpush1.bf16.msra.mxu0 0
    %685 = vmatprep.subr.bf16.mxu0 0
    %686 = vmatpush1.bf16.msra.mxu0 0
    %687 = vmatprep.mubr.bf16.mxu0 0
    %688 = vmatmul.mubr.bf16.gmra.mrb[0].mxu0 %v447
    %v689 = vpop.f32.mrb[0].mxu0
    %v690 = vadd.f32 0.0, %v689
    %v691 = vpop.f32.mrb[0].mxu0
    %v692 = vadd.f32 0.0, %v691
    %v693 = vpop.f32.mrb[0].mxu0
    %v694 = vadd.f32 0.0, %v693
    %v695 = vpop.f32.mrb[0].mxu0
    %v696 = vadd.f32 0.0, %v695
    %697 = vmatprep.mubr.bf16.mxu0 0
    %698 = vmatmul.mubr.bf16.gmra.mrb[0].mxu0 %v448
    %v699 = vpop.f32.mrb[0].mxu0
    %v700 = vadd.f32 0.0, %v699
    %v701 = vpop.f32.mrb[0].mxu0
    %v702 = vadd.f32 0.0, %v701
    %v703 = vpop.f32.mrb[0].mxu0
    %v704 = vadd.f32 0.0, %v703
    %v705 = vpop.f32.mrb[0].mxu0
    %v706 = vadd.f32 0.0, %v705
    %707 = vmatprep.mubr.bf16.mxu0 0
    %708 = vmatmul.mubr.bf16.gmra.mrb[0].mxu0 %v449
    %v709 = vpop.f32.mrb[0].mxu0
    %v710 = vadd.f32 0.0, %v709
    %v711 = vpop.f32.mrb[0].mxu0
    %v712 = vadd.f32 0.0, %v711
    %v713 = vpop.f32.mrb[0].mxu0
    %v714 = vadd.f32 0.0, %v713
    %v715 = vpop.f32.mrb[0].mxu0
    %v716 = vadd.f32 0.0, %v715
    %717 = vmatprep.mubr.bf16.mxu0 0
    %718 = vmatmul.mubr.bf16.gmra.mrb[0].mxu0 %v450
    %v719 = vpop.f32.mrb[0].mxu0
    %v720 = vadd.f32 0.0, %v719
    %v721 = vpop.f32.mrb[0].mxu0
    %v722 = vadd.f32 0.0, %v721
    %v723 = vpop.f32.mrb[0].mxu0
    %v724 = vadd.f32 0.0, %v723
    %v725 = vpop.f32.mrb[0].mxu0
    %v726 = vadd.f32 0.0, %v725
    %727 = vmatprep.mubr.bf16.mxu0 0
    %728 = vmatmul.mubr.bf16.gmra.mrb[0].mxu0 %v451
    %v729 = vpop.f32.mrb[0].mxu0
    %v730 = vadd.f32 0.0, %v729
    %v731 = vpop.f32.mrb[0].mxu0
    %v732 = vadd.f32 0.0, %v731
    %v733 = vpop.f32.mrb[0].mxu0
    %v734 = vadd.f32 0.0, %v733
    %v735 = vpop.f32.mrb[0].mxu0
    %v736 = vadd.f32 0.0, %v735
    %737 = vmatprep.mubr.bf16.mxu0 0
    %738 = vmatmul.mubr.bf16.gmra.mrb[0].mxu0 %v452
    %v739 = vpop.f32.mrb[0].mxu0
    %v740 = vadd.f32 0.0, %v739
    %v741 = vpop.f32.mrb[0].mxu0
    %v742 = vadd.f32 0.0, %v741
    %v743 = vpop.f32.mrb[0].mxu0
    %v744 = vadd.f32 0.0, %v743
    %v745 = vpop.f32.mrb[0].mxu0
    %v746 = vadd.f32 0.0, %v745
    %747 = vmatprep.mubr.bf16.mxu0 0
    %748 = vmatmul.mubr.bf16.gmra.mrb[0].mxu0 %v453
    %v749 = vpop.f32.mrb[0].mxu0
    %v750 = vadd.f32 0.0, %v749
    %v751 = vpop.f32.mrb[0].mxu0
    %v752 = vadd.f32 0.0, %v751
    %v753 = vpop.f32.mrb[0].mxu0
    %v754 = vadd.f32 0.0, %v753
    %v755 = vpop.f32.mrb[0].mxu0
    %v756 = vadd.f32 0.0, %v755
    %757 = vmatprep.mubr.bf16.mxu0 0
    %758 = vmatmul.mubr.bf16.gmra.mrb[0].mxu0 %v454
    %v759 = vpop.f32.mrb[0].mxu0
    %v760 = vadd.f32 0.0, %v759
    %v761 = vpop.f32.mrb[0].mxu0
    %v762 = vadd.f32 0.0, %v761
    %v763 = vpop.f32.mrb[0].mxu0
    %v764 = vadd.f32 0.0, %v763
    %v765 = vpop.f32.mrb[0].mxu0
    %v766 = vadd.f32 0.0, %v765
    %767 = vmatprep.mubr.bf16.mxu0 0
    %768 = vmatmul.mubr.bf16.gmra.mrb[0].mxu0 %v455
    %v769 = vpop.f32.mrb[0].mxu0
    %v770 = vadd.f32 0.0, %v769
    %v771 = vpop.f32.mrb[0].mxu0
    %v772 = vadd.f32 0.0, %v771
    %v773 = vpop.f32.mrb[0].mxu0
    %v774 = vadd.f32 0.0, %v773
    %v775 = vpop.f32.mrb[0].mxu0
    %v776 = vadd.f32 0.0, %v775
    %777 = vmatprep.mubr.bf16.mxu0 0
    %778 = vmatmul.mubr.bf16.gmra.mrb[0].mxu0 %v456
    %v779 = vpop.f32.mrb[0].mxu0
    %v780 = vadd.f32 0.0, %v779
    %v781 = vpop.f32.mrb[0].mxu0
    %v782 = vadd.f32 0.0, %v781
    %v783 = vpop.f32.mrb[0].mxu0
    %v784 = vadd.f32 0.0, %v783
    %v785 = vpop.f32.mrb[0].mxu0
    %v786 = vadd.f32 0.0, %v785
    %787 = vmatprep.mubr.bf16.mxu0 0
    %788 = vmatmul.mubr.bf16.gmra.mrb[0].mxu0 %v457
    %v789 = vpop.f32.mrb[0].mxu0
    %v790 = vadd.f32 0.0, %v789
    %v791 = vpop.f32.mrb[0].mxu0
    %v792 = vadd.f32 0.0, %v791
    %v793 = vpop.f32.mrb[0].mxu0
    %v794 = vadd.f32 0.0, %v793
    %v795 = vpop.f32.mrb[0].mxu0
    %v796 = vadd.f32 0.0, %v795
    %797 = vmatprep.mubr.bf16.mxu0 0
    %798 = vmatmul.mubr.bf16.gmra.mrb[0].mxu0 %v458
    %v799 = vpop.f32.mrb[0].mxu0
    %v800 = vadd.f32 0.0, %v799
    %v801 = vpop.f32.mrb[0].mxu0
    %v802 = vadd.f32 0.0, %v801
    %v803 = vpop.f32.mrb[0].mxu0
    %v804 = vadd.f32 0.0, %v803
    %v805 = vpop.f32.mrb[0].mxu0
    %v806 = vadd.f32 0.0, %v805
    %807 = vmatprep.mubr.bf16.mxu0 0
    %808 = vmatmul.mubr.bf16.gmra.mrb[0].mxu0 %v459
    %v809 = vpop.f32.mrb[0].mxu0
    %v810 = vadd.f32 0.0, %v809
    %v811 = vpop.f32.mrb[0].mxu0
    %v812 = vadd.f32 0.0, %v811
    %v813 = vpop.f32.mrb[0].mxu0
    %v814 = vadd.f32 0.0, %v813
    %v815 = vpop.f32.mrb[0].mxu0
    %v816 = vadd.f32 0.0, %v815
    %817 = vmatprep.mubr.bf16.mxu0 0
    %818 = vmatmul.mubr.bf16.gmra.mrb[0].mxu0 %v460
    %v819 = vpop.f32.mrb[0].mxu0
    %v820 = vadd.f32 0.0, %v819
    %v821 = vpop.f32.mrb[0].mxu0
    %v822 = vadd.f32 0.0, %v821
    %v823 = vpop.f32.mrb[0].mxu0
    %v824 = vadd.f32 0.0, %v823
    %v825 = vpop.f32.mrb[0].mxu0
    %v826 = vadd.f32 0.0, %v825
    %827 = vmatprep.mubr.bf16.mxu0 0
    %828 = vmatmul.mubr.bf16.gmra.mrb[0].mxu0 %v461
    %v829 = vpop.f32.mrb[0].mxu0
    %v830 = vadd.f32 0.0, %v829
    %v831 = vpop.f32.mrb[0].mxu0
    %v832 = vadd.f32 0.0, %v831
    %v833 = vpop.f32.mrb[0].mxu0
    %v834 = vadd.f32 0.0, %v833
    %v835 = vpop.f32.mrb[0].mxu0
    %v836 = vadd.f32 0.0, %v835
    %837 = vmatprep.mubr.bf16.mxu0 0
    %838 = vmatmul.mubr.bf16.gmra.mrb[0].mxu0 %v462
    %v839 = vpop.f32.mrb[0].mxu0
    %v840 = vadd.f32 0.0, %v839
    %v841 = vpop.f32.mrb[0].mxu0
    %v842 = vadd.f32 0.0, %v841
    %v843 = vpop.f32.mrb[0].mxu0
    %v844 = vadd.f32 0.0, %v843
    %v845 = vpop.f32.mrb[0].mxu0
    %v846 = vadd.f32 0.0, %v845
    %847 = vmatprep.mubr.bf16.mxu0 0
    %848 = vmatmul.mubr.bf16.gmra.mrb[0].mxu0 %v463
    %v849 = vpop.f32.mrb[0].mxu0
    %v850 = vadd.f32 0.0, %v849
    %v851 = vpop.f32.mrb[0].mxu0
    %v852 = vadd.f32 0.0, %v851
    %v853 = vpop.f32.mrb[0].mxu0
    %v854 = vadd.f32 0.0, %v853
    %v855 = vpop.f32.mrb[0].mxu0
    %v856 = vadd.f32 0.0, %v855
    %857 = vmatprep.mubr.bf16.mxu0 0
    %858 = vmatmul.mubr.bf16.gmra.mrb[0].mxu0 %v464
    %v859 = vpop.f32.mrb[0].mxu0
    %v860 = vadd.f32 0.0, %v859
    %v861 = vpop.f32.mrb[0].mxu0
    %v862 = vadd.f32 0.0, %v861
    %v863 = vpop.f32.mrb[0].mxu0
    %v864 = vadd.f32 0.0, %v863
    %v865 = vpop.f32.mrb[0].mxu0
    %v866 = vadd.f32 0.0, %v865
    %867 = vmatprep.mubr.bf16.mxu0 0
    %868 = vmatmul.mubr.bf16.gmra.mrb[0].mxu0 %v465
    %v869 = vpop.f32.mrb[0].mxu0
    %v870 = vadd.f32 0.0, %v869
    %v871 = vpop.f32.mrb[0].mxu0
    %v872 = vadd.f32 0.0, %v871
    %v873 = vpop.f32.mrb[0].mxu0
    %v874 = vadd.f32 0.0, %v873
    %v875 = vpop.f32.mrb[0].mxu0
    %v876 = vadd.f32 0.0, %v875
    %877 = vmatprep.mubr.bf16.mxu0 0
    %878 = vmatmul.mubr.bf16.gmra.mrb[0].mxu0 %v466
    %v879 = vpop.f32.mrb[0].mxu0
    %v880 = vadd.f32 0.0, %v879
    %v881 = vpop.f32.mrb[0].mxu0
    %v882 = vadd.f32 0.0, %v881
    %v883 = vpop.f32.mrb[0].mxu0
    %v884 = vadd.f32 0.0, %v883
    %v885 = vpop.f32.mrb[0].mxu0
    %v886 = vadd.f32 0.0, %v885
    %887 = vmatprep.mubr.bf16.mxu0 0
    %888 = vmatmul.mubr.bf16.gmra.mrb[0].mxu0 %v467
    %v889 = vpop.f32.mrb[0].mxu0
    %v890 = vadd.f32 0.0, %v889
    %v891 = vpop.f32.mrb[0].mxu0
    %v892 = vadd.f32 0.0, %v891
    %v893 = vpop.f32.mrb[0].mxu0
    %v894 = vadd.f32 0.0, %v893
    %v895 = vpop.f32.mrb[0].mxu0
    %v896 = vadd.f32 0.0, %v895
    %897 = vmatprep.mubr.bf16.mxu0 0
    %898 = vmatmul.mubr.bf16.gmra.mrb[0].mxu0 %v468
    %v899 = vpop.f32.mrb[0].mxu0
    %v900 = vadd.f32 0.0, %v899
    %v901 = vpop.f32.mrb[0].mxu0
    %v902 = vadd.f32 0.0, %v901
    %v903 = vpop.f32.mrb[0].mxu0
    %v904 = vadd.f32 0.0, %v903
    %v905 = vpop.f32.mrb[0].mxu0
    %v906 = vadd.f32 0.0, %v905
    %907 = vmatprep.mubr.bf16.mxu0 0
    %908 = vmatmul.mubr.bf16.gmra.mrb[0].mxu0 %v469
    %v909 = vpop.f32.mrb[0].mxu0
    %v910 = vadd.f32 0.0, %v909
    %v911 = vpop.f32.mrb[0].mxu0
    %v912 = vadd.f32 0.0, %v911
    %v913 = vpop.f32.mrb[0].mxu0
    %v914 = vadd.f32 0.0, %v913
    %v915 = vpop.f32.mrb[0].mxu0
    %v916 = vadd.f32 0.0, %v915
    %917 = vmatprep.mubr.bf16.mxu0 0
    %918 = vmatmul.mubr.bf16.gmra.mrb[0].mxu0 %v470
    %v919 = vpop.f32.mrb[0].mxu0
    %v920 = vadd.f32 0.0, %v919
    %v921 = vpop.f32.mrb[0].mxu0
    %v922 = vadd.f32 0.0, %v921
    %v923 = vpop.f32.mrb[0].mxu0
    %v924 = vadd.f32 0.0, %v923
    %v925 = vpop.f32.mrb[0].mxu0
    %v926 = vadd.f32 0.0, %v925
    %927 = vmatprep.mubr.bf16.mxu0 0
    %928 = vmatmul.mubr.bf16.gmra.mrb[0].mxu0 %v471
    %v929 = vpop.f32.mrb[0].mxu0
    %v930 = vadd.f32 0.0, %v929
    %v931 = vpop.f32.mrb[0].mxu0
    %v932 = vadd.f32 0.0, %v931
    %v933 = vpop.f32.mrb[0].mxu0
    %v934 = vadd.f32 0.0, %v933
    %v935 = vpop.f32.mrb[0].mxu0
    %v936 = vadd.f32 0.0, %v935
    %937 = vmatprep.mubr.bf16.mxu0 0
    %938 = vmatmul.mubr.bf16.gmra.mrb[0].mxu0 %v472
    %v939 = vpop.f32.mrb[0].mxu0
    %v940 = vadd.f32 0.0, %v939
    %v941 = vpop.f32.mrb[0].mxu0
    %v942 = vadd.f32 0.0, %v941
    %v943 = vpop.f32.mrb[0].mxu0
    %v944 = vadd.f32 0.0, %v943
    %v945 = vpop.f32.mrb[0].mxu0
    %v946 = vadd.f32 0.0, %v945
    %947 = vmatprep.mubr.bf16.mxu0 0
    %948 = vmatmul.mubr.bf16.gmra.mrb[0].mxu0 %v473
    %v949 = vpop.f32.mrb[0].mxu0
    %v950 = vadd.f32 0.0, %v949
    %v951 = vpop.f32.mrb[0].mxu0
    %v952 = vadd.f32 0.0, %v951
    %v953 = vpop.f32.mrb[0].mxu0
    %v954 = vadd.f32 0.0, %v953
    %v955 = vpop.f32.mrb[0].mxu0
    %v956 = vadd.f32 0.0, %v955
    %957 = vmatprep.mubr.bf16.mxu0 0
    %958 = vmatmul.mubr.bf16.gmra.mrb[0].mxu0 %v474
    %v959 = vpop.f32.mrb[0].mxu0
    %v960 = vadd.f32 0.0, %v959
    %v961 = vpop.f32.mrb[0].mxu0
    %v962 = vadd.f32 0.0, %v961
    %v963 = vpop.f32.mrb[0].mxu0
    %v964 = vadd.f32 0.0, %v963
    %v965 = vpop.f32.mrb[0].mxu0
    %v966 = vadd.f32 0.0, %v965
    %967 = vmatprep.mubr.bf16.mxu0 0
    %968 = vmatmul.mubr.bf16.gmra.mrb[0].mxu0 %v475
    %v969 = vpop.f32.mrb[0].mxu0
    %v970 = vadd.f32 0.0, %v969
    %v971 = vpop.f32.mrb[0].mxu0
    %v972 = vadd.f32 0.0, %v971
    %v973 = vpop.f32.mrb[0].mxu0
    %v974 = vadd.f32 0.0, %v973
    %v975 = vpop.f32.mrb[0].mxu0
    %v976 = vadd.f32 0.0, %v975
    %977 = vmatprep.mubr.bf16.mxu0 0
    %978 = vmatmul.mubr.bf16.gmra.mrb[0].mxu0 %v476
    %v979 = vpop.f32.mrb[0].mxu0
    %v980 = vadd.f32 0.0, %v979
    %v981 = vpop.f32.mrb[0].mxu0
    %v982 = vadd.f32 0.0, %v981
    %v983 = vpop.f32.mrb[0].mxu0
    %v984 = vadd.f32 0.0, %v983
    %v985 = vpop.f32.mrb[0].mxu0
    %v986 = vadd.f32 0.0, %v985
    %987 = vmatprep.mubr.bf16.mxu0 0
    %988 = vmatmul.mubr.bf16.gmra.mrb[0].mxu0 %v477
    %v989 = vpop.f32.mrb[0].mxu0
    %v990 = vadd.f32 0.0, %v989
    %v991 = vpop.f32.mrb[0].mxu0
    %v992 = vadd.f32 0.0, %v991
    %v993 = vpop.f32.mrb[0].mxu0
    %v994 = vadd.f32 0.0, %v993
    %v995 = vpop.f32.mrb[0].mxu0
    %v996 = vadd.f32 0.0, %v995
    %997 = vmatprep.mubr.bf16.mxu0 0
    %998 = vmatmul.mubr.bf16.gmra.mrb[0].mxu0 %v478
    %v999 = vpop.f32.mrb[0].mxu0
    %v1000 = vadd.f32 0.0, %v999
    %v1001 = vpop.f32.mrb[0].mxu0
    %v1002 = vadd.f32 0.0, %v1001
    %v1003 = vpop.f32.mrb[0].mxu0
    %v1004 = vadd.f32 0.0, %v1003
    %v1005 = vpop.f32.mrb[0].mxu0
    %v1006 = vadd.f32 0.0, %v1005
    %1007 = vmatprep.mubr.bf16.mxu0 0
    %1008 = vmatmul.mubr.bf16.gmra.mrb[0].mxu0 %v479
    %v1009 = vpop.f32.mrb[0].mxu0
    %v1010 = vadd.f32 0.0, %v1009
    %v1011 = vpop.f32.mrb[0].mxu0
    %v1012 = vadd.f32 0.0, %v1011
    %v1013 = vpop.f32.mrb[0].mxu0
    %v1014 = vadd.f32 0.0, %v1013
    %v1015 = vpop.f32.mrb[0].mxu0
    %v1016 = vadd.f32 0.0, %v1015
    %1017 = vmatprep.mubr.bf16.mxu0 0
    %1018 = vmatmul.mubr.bf16.gmra.mrb[0].mxu0 %v480
    %v1019 = vpop.f32.mrb[0].mxu0
    %v1020 = vadd.f32 0.0, %v1019
    %v1021 = vpop.f32.mrb[0].mxu0
    %v1022 = vadd.f32 0.0, %v1021
    %v1023 = vpop.f32.mrb[0].mxu0
    %v1024 = vadd.f32 0.0, %v1023
    %v1025 = vpop.f32.mrb[0].mxu0
    %v1026 = vadd.f32 0.0, %v1025
    %1027 = vmatprep.mubr.bf16.mxu0 0
    %1028 = vmatmul.mubr.bf16.gmra.mrb[0].mxu0 %v481
    %v1029 = vpop.f32.mrb[0].mxu0
    %v1030 = vadd.f32 0.0, %v1029
    %v1031 = vpop.f32.mrb[0].mxu0
    %v1032 = vadd.f32 0.0, %v1031
    %v1033 = vpop.f32.mrb[0].mxu0
    %v1034 = vadd.f32 0.0, %v1033
    %v1035 = vpop.f32.mrb[0].mxu0
    %v1036 = vadd.f32 0.0, %v1035
    %1037 = vmatprep.mubr.bf16.mxu0 0
    %1038 = vmatmul.mubr.bf16.gmra.mrb[0].mxu0 %v482
    %v1039 = vpop.f32.mrb[0].mxu0
    %v1040 = vadd.f32 0.0, %v1039
    %v1041 = vpop.f32.mrb[0].mxu0
    %v1042 = vadd.f32 0.0, %v1041
    %v1043 = vpop.f32.mrb[0].mxu0
    %v1044 = vadd.f32 0.0, %v1043
    %v1045 = vpop.f32.mrb[0].mxu0
    %v1046 = vadd.f32 0.0, %v1045
    %1047 = vmatprep.mubr.bf16.mxu0 0
    %1048 = vmatmul.mubr.bf16.gmra.mrb[0].mxu0 %v483
    %v1049 = vpop.f32.mrb[0].mxu0
    %v1050 = vadd.f32 0.0, %v1049
    %v1051 = vpop.f32.mrb[0].mxu0
    %v1052 = vadd.f32 0.0, %v1051
    %v1053 = vpop.f32.mrb[0].mxu0
    %v1054 = vadd.f32 0.0, %v1053
    %v1055 = vpop.f32.mrb[0].mxu0
    %v1056 = vadd.f32 0.0, %v1055
    %1057 = vmatprep.mubr.bf16.mxu0 0
    %1058 = vmatmul.mubr.bf16.gmra.mrb[0].mxu0 %v484
    %v1059 = vpop.f32.mrb[0].mxu0
    %v1060 = vadd.f32 0.0, %v1059
    %v1061 = vpop.f32.mrb[0].mxu0
    %v1062 = vadd.f32 0.0, %v1061
    %v1063 = vpop.f32.mrb[0].mxu0
    %v1064 = vadd.f32 0.0, %v1063
    %v1065 = vpop.f32.mrb[0].mxu0
    %v1066 = vadd.f32 0.0, %v1065
    %1067 = vmatprep.mubr.bf16.mxu0 0
    %1068 = vmatmul.mubr.bf16.gmra.mrb[0].mxu0 %v485
    %v1069 = vpop.f32.mrb[0].mxu0
    %v1070 = vadd.f32 0.0, %v1069
    %v1071 = vpop.f32.mrb[0].mxu0
    %v1072 = vadd.f32 0.0, %v1071
    %v1073 = vpop.f32.mrb[0].mxu0
    %v1074 = vadd.f32 0.0, %v1073
    %v1075 = vpop.f32.mrb[0].mxu0
    %v1076 = vadd.f32 0.0, %v1075
    %1077 = vmatprep.mubr.bf16.mxu0 0
    %1078 = vmatmul.mubr.bf16.gmra.mrb[0].mxu0 %v486
    %v1079 = vpop.f32.mrb[0].mxu0
    %v1080 = vadd.f32 0.0, %v1079
    %v1081 = vpop.f32.mrb[0].mxu0
    %v1082 = vadd.f32 0.0, %v1081
    %v1083 = vpop.f32.mrb[0].mxu0
    %v1084 = vadd.f32 0.0, %v1083
    %v1085 = vpop.f32.mrb[0].mxu0
    %v1086 = vadd.f32 0.0, %v1085
    %1087 = vmatprep.mubr.bf16.mxu0 0
    %1088 = vmatmul.mubr.bf16.gmra.mrb[0].mxu0 %v487
    %v1089 = vpop.f32.mrb[0].mxu0
    %v1090 = vadd.f32 0.0, %v1089
    %v1091 = vpop.f32.mrb[0].mxu0
    %v1092 = vadd.f32 0.0, %v1091
    %v1093 = vpop.f32.mrb[0].mxu0
    %v1094 = vadd.f32 0.0, %v1093
    %v1095 = vpop.f32.mrb[0].mxu0
    %v1096 = vadd.f32 0.0, %v1095
    %1097 = vmatprep.mubr.bf16.mxu0 0
    %1098 = vmatmul.mubr.bf16.gmra.mrb[0].mxu0 %v488
    %v1099 = vpop.f32.mrb[0].mxu0
    %v1100 = vadd.f32 0.0, %v1099
    %v1101 = vpop.f32.mrb[0].mxu0
    %v1102 = vadd.f32 0.0, %v1101
    %v1103 = vpop.f32.mrb[0].mxu0
    %v1104 = vadd.f32 0.0, %v1103
    %v1105 = vpop.f32.mrb[0].mxu0
    %v1106 = vadd.f32 0.0, %v1105
    %1107 = vmatprep.mubr.bf16.mxu0 0
    %1108 = vmatmul.mubr.bf16.gmra.mrb[0].mxu0 %v489
    %v1109 = vpop.f32.mrb[0].mxu0
    %v1110 = vadd.f32 0.0, %v1109
    %v1111 = vpop.f32.mrb[0].mxu0
    %v1112 = vadd.f32 0.0, %v1111
    %v1113 = vpop.f32.mrb[0].mxu0
    %v1114 = vadd.f32 0.0, %v1113
    %v1115 = vpop.f32.mrb[0].mxu0
    %v1116 = vadd.f32 0.0, %v1115
    %1117 = vmatprep.mubr.bf16.mxu0 0
    %1118 = vmatmul.mubr.bf16.gmra.mrb[0].mxu0 %v490
    %v1119 = vpop.f32.mrb[0].mxu0
    %v1120 = vadd.f32 0.0, %v1119
    %v1121 = vpop.f32.mrb[0].mxu0
    %v1122 = vadd.f32 0.0, %v1121
    %v1123 = vpop.f32.mrb[0].mxu0
    %v1124 = vadd.f32 0.0, %v1123
    %v1125 = vpop.f32.mrb[0].mxu0
    %v1126 = vadd.f32 0.0, %v1125
    %1127 = vmatprep.mubr.bf16.mxu0 0
    %1128 = vmatmul.mubr.bf16.gmra.mrb[0].mxu0 %v491
    %v1129 = vpop.f32.mrb[0].mxu0
    %v1130 = vadd.f32 0.0, %v1129
    %v1131 = vpop.f32.mrb[0].mxu0
    %v1132 = vadd.f32 0.0, %v1131
    %v1133 = vpop.f32.mrb[0].mxu0
    %v1134 = vadd.f32 0.0, %v1133
    %v1135 = vpop.f32.mrb[0].mxu0
    %v1136 = vadd.f32 0.0, %v1135
    %1137 = vmatprep.mubr.bf16.mxu0 0
    %1138 = vmatmul.mubr.bf16.gmra.mrb[0].mxu0 %v492
    %v1139 = vpop.f32.mrb[0].mxu0
    %v1140 = vadd.f32 0.0, %v1139
    %v1141 = vpop.f32.mrb[0].mxu0
    %v1142 = vadd.f32 0.0, %v1141
    %v1143 = vpop.f32.mrb[0].mxu0
    %v1144 = vadd.f32 0.0, %v1143
    %v1145 = vpop.f32.mrb[0].mxu0
    %v1146 = vadd.f32 0.0, %v1145
    %1147 = vmatprep.mubr.bf16.mxu0 0
    %1148 = vmatmul.mubr.bf16.gmra.mrb[0].mxu0 %v493
    %v1149 = vpop.f32.mrb[0].mxu0
    %v1150 = vadd.f32 0.0, %v1149
    %v1151 = vpop.f32.mrb[0].mxu0
    %v1152 = vadd.f32 0.0, %v1151
    %v1153 = vpop.f32.mrb[0].mxu0
    %v1154 = vadd.f32 0.0, %v1153
    %v1155 = vpop.f32.mrb[0].mxu0
    %v1156 = vadd.f32 0.0, %v1155
    %1157 = vmatprep.mubr.bf16.mxu0 0
    %1158 = vmatmul.mubr.bf16.gmra.mrb[0].mxu0 %v494
    %v1159 = vpop.f32.mrb[0].mxu0
    %v1160 = vadd.f32 0.0, %v1159
    %v1161 = vpop.f32.mrb[0].mxu0
    %v1162 = vadd.f32 0.0, %v1161
    %v1163 = vpop.f32.mrb[0].mxu0
    %v1164 = vadd.f32 0.0, %v1163
    %v1165 = vpop.f32.mrb[0].mxu0
    %v1166 = vadd.f32 0.0, %v1165
    %1167 = vmatprep.mubr.bf16.mxu0 0
    %1168 = vmatmul.mubr.bf16.gmra.mrb[0].mxu0 %v495
    %v1169 = vpop.f32.mrb[0].mxu0
    %v1170 = vadd.f32 0.0, %v1169
    %v1171 = vpop.f32.mrb[0].mxu0
    %v1172 = vadd.f32 0.0, %v1171
    %v1173 = vpop.f32.mrb[0].mxu0
    %v1174 = vadd.f32 0.0, %v1173
    %v1175 = vpop.f32.mrb[0].mxu0
    %v1176 = vadd.f32 0.0, %v1175
    %1177 = vmatprep.mubr.bf16.mxu0 0
    %1178 = vmatmul.mubr.bf16.gmra.mrb[0].mxu0 %v496
    %v1179 = vpop.f32.mrb[0].mxu0
    %v1180 = vadd.f32 0.0, %v1179
    %v1181 = vpop.f32.mrb[0].mxu0
    %v1182 = vadd.f32 0.0, %v1181
    %v1183 = vpop.f32.mrb[0].mxu0
    %v1184 = vadd.f32 0.0, %v1183
    %v1185 = vpop.f32.mrb[0].mxu0
    %v1186 = vadd.f32 0.0, %v1185
    %1187 = vmatprep.mubr.bf16.mxu0 0
    %1188 = vmatmul.mubr.bf16.gmra.mrb[0].mxu0 %v497
    %v1189 = vpop.f32.mrb[0].mxu0
    %v1190 = vadd.f32 0.0, %v1189
    %v1191 = vpop.f32.mrb[0].mxu0
    %v1192 = vadd.f32 0.0, %v1191
    %v1193 = vpop.f32.mrb[0].mxu0
    %v1194 = vadd.f32 0.0, %v1193
    %v1195 = vpop.f32.mrb[0].mxu0
    %v1196 = vadd.f32 0.0, %v1195
    %1197 = vmatprep.mubr.bf16.mxu0 0
    %1198 = vmatmul.mubr.bf16.gmra.mrb[0].mxu0 %v498
    %v1199 = vpop.f32.mrb[0].mxu0
    %v1200 = vadd.f32 0.0, %v1199
    %v1201 = vpop.f32.mrb[0].mxu0
    %v1202 = vadd.f32 0.0, %v1201
    %v1203 = vpop.f32.mrb[0].mxu0
    %v1204 = vadd.f32 0.0, %v1203
    %v1205 = vpop.f32.mrb[0].mxu0
    %v1206 = vadd.f32 0.0, %v1205
    %1207 = vmatprep.mubr.bf16.mxu0 0
    %1208 = vmatmul.mubr.bf16.gmra.mrb[0].mxu0 %v499
    %v1209 = vpop.f32.mrb[0].mxu0
    %v1210 = vadd.f32 0.0, %v1209
    %v1211 = vpop.f32.mrb[0].mxu0
    %v1212 = vadd.f32 0.0, %v1211
    %v1213 = vpop.f32.mrb[0].mxu0
    %v1214 = vadd.f32 0.0, %v1213
    %v1215 = vpop.f32.mrb[0].mxu0
    %v1216 = vadd.f32 0.0, %v1215
    %1217 = vmatprep.mubr.bf16.mxu0 0
    %1218 = vmatmul.mubr.bf16.gmra.mrb[0].mxu0 %v500
    %v1219 = vpop.f32.mrb[0].mxu0
    %v1220 = vadd.f32 0.0, %v1219
    %v1221 = vpop.f32.mrb[0].mxu0
    %v1222 = vadd.f32 0.0, %v1221
    %v1223 = vpop.f32.mrb[0].mxu0
    %v1224 = vadd.f32 0.0, %v1223
    %v1225 = vpop.f32.mrb[0].mxu0
    %v1226 = vadd.f32 0.0, %v1225
    %1227 = vmatprep.mubr.bf16.mxu0 0
    %1228 = vmatmul.mubr.bf16.gmra.mrb[0].mxu0 %v501
    %v1229 = vpop.f32.mrb[0].mxu0
    %v1230 = vadd.f32 0.0, %v1229
    %v1231 = vpop.f32.mrb[0].mxu0
    %v1232 = vadd.f32 0.0, %v1231
    %v1233 = vpop.f32.mrb[0].mxu0
    %v1234 = vadd.f32 0.0, %v1233
    %v1235 = vpop.f32.mrb[0].mxu0
    %v1236 = vadd.f32 0.0, %v1235
    %1237 = vmatprep.mubr.bf16.mxu0 0
    %1238 = vmatmul.mubr.bf16.gmra.mrb[0].mxu0 %v502
    %v1239 = vpop.f32.mrb[0].mxu0
    %v1240 = vadd.f32 0.0, %v1239
    %v1241 = vpop.f32.mrb[0].mxu0
    %v1242 = vadd.f32 0.0, %v1241
    %v1243 = vpop.f32.mrb[0].mxu0
    %v1244 = vadd.f32 0.0, %v1243
    %v1245 = vpop.f32.mrb[0].mxu0
    %v1246 = vadd.f32 0.0, %v1245
    %1247 = vmatprep.mubr.bf16.mxu0 0
    %1248 = vmatmul.mubr.bf16.gmra.mrb[0].mxu0 %v503
    %v1249 = vpop.f32.mrb[0].mxu0
    %v1250 = vadd.f32 0.0, %v1249
    %v1251 = vpop.f32.mrb[0].mxu0
    %v1252 = vadd.f32 0.0, %v1251
    %v1253 = vpop.f32.mrb[0].mxu0
    %v1254 = vadd.f32 0.0, %v1253
    %v1255 = vpop.f32.mrb[0].mxu0
    %v1256 = vadd.f32 0.0, %v1255
    %1257 = vmatprep.mubr.bf16.mxu0 0
    %1258 = vmatmul.mubr.bf16.gmra.mrb[0].mxu0 %v504
    %v1259 = vpop.f32.mrb[0].mxu0
    %v1260 = vadd.f32 0.0, %v1259
    %v1261 = vpop.f32.mrb[0].mxu0
    %v1262 = vadd.f32 0.0, %v1261
    %v1263 = vpop.f32.mrb[0].mxu0
    %v1264 = vadd.f32 0.0, %v1263
    %v1265 = vpop.f32.mrb[0].mxu0
    %v1266 = vadd.f32 0.0, %v1265
    %1267 = vmatprep.mubr.bf16.mxu0 0
    %1268 = vmatmul.mubr.bf16.gmra.mrb[0].mxu0 %v505
    %v1269 = vpop.f32.mrb[0].mxu0
    %v1270 = vadd.f32 0.0, %v1269
    %v1271 = vpop.f32.mrb[0].mxu0
    %v1272 = vadd.f32 0.0, %v1271
    %v1273 = vpop.f32.mrb[0].mxu0
    %v1274 = vadd.f32 0.0, %v1273
    %v1275 = vpop.f32.mrb[0].mxu0
    %v1276 = vadd.f32 0.0, %v1275
    %1277 = vmatprep.mubr.bf16.mxu0 0
    %1278 = vmatmul.mubr.bf16.gmra.mrb[0].mxu0 %v506
    %v1279 = vpop.f32.mrb[0].mxu0
    %v1280 = vadd.f32 0.0, %v1279
    %v1281 = vpop.f32.mrb[0].mxu0
    %v1282 = vadd.f32 0.0, %v1281
    %v1283 = vpop.f32.mrb[0].mxu0
    %v1284 = vadd.f32 0.0, %v1283
    %v1285 = vpop.f32.mrb[0].mxu0
    %v1286 = vadd.f32 0.0, %v1285
    %1287 = vmatprep.mubr.bf16.mxu0 0
    %1288 = vmatmul.mubr.bf16.gmra.mrb[0].mxu0 %v507
    %v1289 = vpop.f32.mrb[0].mxu0
    %v1290 = vadd.f32 0.0, %v1289
    %v1291 = vpop.f32.mrb[0].mxu0
    %v1292 = vadd.f32 0.0, %v1291
    %v1293 = vpop.f32.mrb[0].mxu0
    %v1294 = vadd.f32 0.0, %v1293
    %v1295 = vpop.f32.mrb[0].mxu0
    %v1296 = vadd.f32 0.0, %v1295
    %1297 = vmatprep.mubr.bf16.mxu0 0
    %1298 = vmatmul.mubr.bf16.gmra.mrb[0].mxu0 %v508
    %v1299 = vpop.f32.mrb[0].mxu0
    %v1300 = vadd.f32 0.0, %v1299
    %v1301 = vpop.f32.mrb[0].mxu0
    %v1302 = vadd.f32 0.0, %v1301
    %v1303 = vpop.f32.mrb[0].mxu0
    %v1304 = vadd.f32 0.0, %v1303
    %v1305 = vpop.f32.mrb[0].mxu0
    %v1306 = vadd.f32 0.0, %v1305
    %1307 = vmatprep.mubr.bf16.mxu0 0
    %1308 = vmatmul.mubr.bf16.gmra.mrb[0].mxu0 %v509
    %v1309 = vpop.f32.mrb[0].mxu0
    %v1310 = vadd.f32 0.0, %v1309
    %v1311 = vpop.f32.mrb[0].mxu0
    %v1312 = vadd.f32 0.0, %v1311
    %v1313 = vpop.f32.mrb[0].mxu0
    %v1314 = vadd.f32 0.0, %v1313
    %v1315 = vpop.f32.mrb[0].mxu0
    %v1316 = vadd.f32 0.0, %v1315
    %1317 = vmatprep.mubr.bf16.mxu0 0
    %1318 = vmatmul.mubr.bf16.gmra.mrb[0].mxu0 %v510
    %v1319 = vpop.f32.mrb[0].mxu0
    %v1320 = vadd.f32 0.0, %v1319
    %v1321 = vpop.f32.mrb[0].mxu0
    %v1322 = vadd.f32 0.0, %v1321
    %v1323 = vpop.f32.mrb[0].mxu0
    %v1324 = vadd.f32 0.0, %v1323
    %v1325 = vpop.f32.mrb[0].mxu0
    %v1326 = vadd.f32 0.0, %v1325
    %1327 = vdwg.mxu0
    %v1328 = vpack.c.bf16 %v694, %v690
    %v1329 = vpack.c.bf16 %v704, %v700
    %v1330 = vpack.c.bf16 %v714, %v710
    %v1331 = vpack.c.bf16 %v724, %v720
    %v1332 = vpack.c.bf16 %v734, %v730
    %v1333 = vpack.c.bf16 %v744, %v740
    %v1334 = vpack.c.bf16 %v754, %v750
    %v1335 = vpack.c.bf16 %v764, %v760
    %v1336 = vpack.c.bf16 %v774, %v770
    %v1337 = vpack.c.bf16 %v784, %v780
    %v1338 = vpack.c.bf16 %v794, %v790
    %v1339 = vpack.c.bf16 %v804, %v800
    %v1340 = vpack.c.bf16 %v814, %v810
    %v1341 = vpack.c.bf16 %v824, %v820
    %v1342 = vpack.c.bf16 %v834, %v830
    %v1343 = vpack.c.bf16 %v844, %v840
    %v1344 = vpack.c.bf16 %v854, %v850
    %v1345 = vpack.c.bf16 %v864, %v860
    %v1346 = vpack.c.bf16 %v874, %v870
    %v1347 = vpack.c.bf16 %v884, %v880
    %v1348 = vpack.c.bf16 %v894, %v890
    %v1349 = vpack.c.bf16 %v904, %v900
    %v1350 = vpack.c.bf16 %v914, %v910
    %v1351 = vpack.c.bf16 %v924, %v920
    %v1352 = vpack.c.bf16 %v934, %v930
    %v1353 = vpack.c.bf16 %v944, %v940
    %v1354 = vpack.c.bf16 %v954, %v950
    %v1355 = vpack.c.bf16 %v964, %v960
    %v1356 = vpack.c.bf16 %v974, %v970
    %v1357 = vpack.c.bf16 %v984, %v980
    %v1358 = vpack.c.bf16 %v994, %v990
    %v1359 = vpack.c.bf16 %v1004, %v1000
    %v1360 = vpack.c.bf16 %v1014, %v1010
    %v1361 = vpack.c.bf16 %v1024, %v1020
    %v1362 = vpack.c.bf16 %v1034, %v1030
    %v1363 = vpack.c.bf16 %v1044, %v1040
    %v1364 = vpack.c.bf16 %v1054, %v1050
    %v1365 = vpack.c.bf16 %v1064, %v1060
    %v1366 = vpack.c.bf16 %v1074, %v1070
    %v1367 = vpack.c.bf16 %v1084, %v1080
    %v1368 = vpack.c.bf16 %v1094, %v1090
    %v1369 = vpack.c.bf16 %v1104, %v1100
    %v1370 = vpack.c.bf16 %v1114, %v1110
    %v1371 = vpack.c.bf16 %v1124, %v1120
    %v1372 = vpack.c.bf16 %v1134, %v1130
    %v1373 = vpack.c.bf16 %v1144, %v1140
    %v1374 = vpack.c.bf16 %v1154, %v1150
    %v1375 = vpack.c.bf16 %v1164, %v1160
    %v1376 = vpack.c.bf16 %v1174, %v1170
    %v1377 = vpack.c.bf16 %v1184, %v1180
    %v1378 = vpack.c.bf16 %v1194, %v1190
    %v1379 = vpack.c.bf16 %v1204, %v1200
    %v1380 = vpack.c.bf16 %v1214, %v1210
    %v1381 = vpack.c.bf16 %v1224, %v1220
    %v1382 = vpack.c.bf16 %v1234, %v1230
    %v1383 = vpack.c.bf16 %v1244, %v1240
    %v1384 = vpack.c.bf16 %v1254, %v1250
    %v1385 = vpack.c.bf16 %v1264, %v1260
    %v1386 = vpack.c.bf16 %v1274, %v1270
    %v1387 = vpack.c.bf16 %v1284, %v1280
    %v1388 = vpack.c.bf16 %v1294, %v1290
    %v1389 = vpack.c.bf16 %v1304, %v1300
    %v1390 = vpack.c.bf16 %v1314, %v1310
    %v1391 = vpack.c.bf16 %v1324, %v1320
    %v1456 = vunpack.c.l.b16 %v1328
    %v1457 = vunpack.c.h.b16 %v1328
    %v1458 = vunpack.c.l.b16 %v1329
    %v1459 = vunpack.c.h.b16 %v1329
    %v1460 = vunpack.c.l.b16 %v1330
    %v1461 = vunpack.c.h.b16 %v1330
    %v1462 = vunpack.c.l.b16 %v1331
    %v1463 = vunpack.c.h.b16 %v1331
    %v1464 = vunpack.c.l.b16 %v1332
    %v1465 = vunpack.c.h.b16 %v1332
    %v1466 = vunpack.c.l.b16 %v1333
    %v1467 = vunpack.c.h.b16 %v1333
    %v1468 = vunpack.c.l.b16 %v1334
    %v1469 = vunpack.c.h.b16 %v1334
    %v1470 = vunpack.c.l.b16 %v1335
    %v1471 = vunpack.c.h.b16 %v1335
    %v1472 = vunpack.c.l.b16 %v1336
    %v1473 = vunpack.c.h.b16 %v1336
    %v1474 = vunpack.c.l.b16 %v1337
    %v1475 = vunpack.c.h.b16 %v1337
    %v1476 = vunpack.c.l.b16 %v1338
    %v1477 = vunpack.c.h.b16 %v1338
    %v1478 = vunpack.c.l.b16 %v1339
    %v1479 = vunpack.c.h.b16 %v1339
    %v1480 = vunpack.c.l.b16 %v1340
    %v1481 = vunpack.c.h.b16 %v1340
    %v1482 = vunpack.c.l.b16 %v1341
    %v1483 = vunpack.c.h.b16 %v1341
    %v1484 = vunpack.c.l.b16 %v1342
    %v1485 = vunpack.c.h.b16 %v1342
    %v1486 = vunpack.c.l.b16 %v1343
    %v1487 = vunpack.c.h.b16 %v1343
    %v1488 = vunpack.c.l.b16 %v1344
    %v1489 = vunpack.c.h.b16 %v1344
    %v1490 = vunpack.c.l.b16 %v1345
    %v1491 = vunpack.c.h.b16 %v1345
    %v1492 = vunpack.c.l.b16 %v1346
    %v1493 = vunpack.c.h.b16 %v1346
    %v1494 = vunpack.c.l.b16 %v1347
    %v1495 = vunpack.c.h.b16 %v1347
    %v1496 = vunpack.c.l.b16 %v1348
    %v1497 = vunpack.c.h.b16 %v1348
    %v1498 = vunpack.c.l.b16 %v1349
    %v1499 = vunpack.c.h.b16 %v1349
    %v1500 = vunpack.c.l.b16 %v1350
    %v1501 = vunpack.c.h.b16 %v1350
    %v1502 = vunpack.c.l.b16 %v1351
    %v1503 = vunpack.c.h.b16 %v1351
    %v1504 = vunpack.c.l.b16 %v1352
    %v1505 = vunpack.c.h.b16 %v1352
    %v1506 = vunpack.c.l.b16 %v1353
    %v1507 = vunpack.c.h.b16 %v1353
    %v1508 = vunpack.c.l.b16 %v1354
    %v1509 = vunpack.c.h.b16 %v1354
    %v1510 = vunpack.c.l.b16 %v1355
    %v1511 = vunpack.c.h.b16 %v1355
    %v1512 = vunpack.c.l.b16 %v1356
    %v1513 = vunpack.c.h.b16 %v1356
    %v1514 = vunpack.c.l.b16 %v1357
    %v1515 = vunpack.c.h.b16 %v1357
    %v1516 = vunpack.c.l.b16 %v1358
    %v1517 = vunpack.c.h.b16 %v1358
    %v1518 = vunpack.c.l.b16 %v1359
    %v1519 = vunpack.c.h.b16 %v1359
    %v1520 = vunpack.c.l.b16 %v1360
    %v1521 = vunpack.c.h.b16 %v1360
    %v1522 = vunpack.c.l.b16 %v1361
    %v1523 = vunpack.c.h.b16 %v1361
    %v1524 = vunpack.c.l.b16 %v1362
    %v1525 = vunpack.c.h.b16 %v1362
    %v1526 = vunpack.c.l.b16 %v1363
    %v1527 = vunpack.c.h.b16 %v1363
    %v1528 = vunpack.c.l.b16 %v1364
    %v1529 = vunpack.c.h.b16 %v1364
    %v1530 = vunpack.c.l.b16 %v1365
    %v1531 = vunpack.c.h.b16 %v1365
    %v1532 = vunpack.c.l.b16 %v1366
    %v1533 = vunpack.c.h.b16 %v1366
    %v1534 = vunpack.c.l.b16 %v1367
    %v1535 = vunpack.c.h.b16 %v1367
    %v1536 = vunpack.c.l.b16 %v1368
    %v1537 = vunpack.c.h.b16 %v1368
    %v1538 = vunpack.c.l.b16 %v1369
    %v1539 = vunpack.c.h.b16 %v1369
    %v1540 = vunpack.c.l.b16 %v1370
    %v1541 = vunpack.c.h.b16 %v1370
    %v1542 = vunpack.c.l.b16 %v1371
    %v1543 = vunpack.c.h.b16 %v1371
    %v1544 = vunpack.c.l.b16 %v1372
    %v1545 = vunpack.c.h.b16 %v1372
    %v1546 = vunpack.c.l.b16 %v1373
    %v1547 = vunpack.c.h.b16 %v1373
    %v1548 = vunpack.c.l.b16 %v1374
    %v1549 = vunpack.c.h.b16 %v1374
    %v1550 = vunpack.c.l.b16 %v1375
    %v1551 = vunpack.c.h.b16 %v1375
    %v1552 = vunpack.c.l.b16 %v1376
    %v1553 = vunpack.c.h.b16 %v1376
    %v1554 = vunpack.c.l.b16 %v1377
    %v1555 = vunpack.c.h.b16 %v1377
    %v1556 = vunpack.c.l.b16 %v1378
    %v1557 = vunpack.c.h.b16 %v1378
    %v1558 = vunpack.c.l.b16 %v1379
    %v1559 = vunpack.c.h.b16 %v1379
    %v1560 = vunpack.c.l.b16 %v1380
    %v1561 = vunpack.c.h.b16 %v1380
    %v1562 = vunpack.c.l.b16 %v1381
    %v1563 = vunpack.c.h.b16 %v1381
    %v1564 = vunpack.c.l.b16 %v1382
    %v1565 = vunpack.c.h.b16 %v1382
    %v1566 = vunpack.c.l.b16 %v1383
    %v1567 = vunpack.c.h.b16 %v1383
    %v1568 = vunpack.c.l.b16 %v1384
    %v1569 = vunpack.c.h.b16 %v1384
    %v1570 = vunpack.c.l.b16 %v1385
    %v1571 = vunpack.c.h.b16 %v1385
    %v1572 = vunpack.c.l.b16 %v1386
    %v1573 = vunpack.c.h.b16 %v1386
    %v1574 = vunpack.c.l.b16 %v1387
    %v1575 = vunpack.c.h.b16 %v1387
    %v1576 = vunpack.c.l.b16 %v1388
    %v1577 = vunpack.c.h.b16 %v1388
    %v1578 = vunpack.c.l.b16 %v1389
    %v1579 = vunpack.c.h.b16 %v1389
    %v1580 = vunpack.c.l.b16 %v1390
    %v1581 = vunpack.c.h.b16 %v1390
    %v1582 = vunpack.c.l.b16 %v1391
    %v1583 = vunpack.c.h.b16 %v1391
    %v1584 = vpack.c.b16 %v1456, %v1456
    %v1585 = vpack.c.b16 %v1457, %v1457
    %v1586 = vpack.c.b16 %v1458, %v1458
    %v1587 = vpack.c.b16 %v1459, %v1459
    %v1588 = vpack.c.b16 %v1460, %v1460
    %v1589 = vpack.c.b16 %v1461, %v1461
    %v1590 = vpack.c.b16 %v1462, %v1462
    %v1591 = vpack.c.b16 %v1463, %v1463
    %v1592 = vpack.c.b16 %v1464, %v1464
    %v1593 = vpack.c.b16 %v1465, %v1465
    %v1594 = vpack.c.b16 %v1466, %v1466
    %v1595 = vpack.c.b16 %v1467, %v1467
    %v1596 = vpack.c.b16 %v1468, %v1468
    %v1597 = vpack.c.b16 %v1469, %v1469
    %v1598 = vpack.c.b16 %v1470, %v1470
    %v1599 = vpack.c.b16 %v1471, %v1471
    %v1600 = vpack.c.b16 %v1472, %v1472
    %v1601 = vpack.c.b16 %v1473, %v1473
    %v1602 = vpack.c.b16 %v1474, %v1474
    %v1603 = vpack.c.b16 %v1475, %v1475
    %v1604 = vpack.c.b16 %v1476, %v1476
    %v1605 = vpack.c.b16 %v1477, %v1477
    %v1606 = vpack.c.b16 %v1478, %v1478
    %v1607 = vpack.c.b16 %v1479, %v1479
    %v1608 = vpack.c.b16 %v1480, %v1480
    %v1609 = vpack.c.b16 %v1481, %v1481
    %v1610 = vpack.c.b16 %v1482, %v1482
    %v1611 = vpack.c.b16 %v1483, %v1483
    %v1612 = vpack.c.b16 %v1484, %v1484
    %v1613 = vpack.c.b16 %v1485, %v1485
    %v1614 = vpack.c.b16 %v1486, %v1486
    %v1615 = vpack.c.b16 %v1487, %v1487
    %v1616 = vpack.c.b16 %v1488, %v1488
    %v1617 = vpack.c.b16 %v1489, %v1489
    %v1618 = vpack.c.b16 %v1490, %v1490
    %v1619 = vpack.c.b16 %v1491, %v1491
    %v1620 = vpack.c.b16 %v1492, %v1492
    %v1621 = vpack.c.b16 %v1493, %v1493
    %v1622 = vpack.c.b16 %v1494, %v1494
    %v1623 = vpack.c.b16 %v1495, %v1495
    %v1624 = vpack.c.b16 %v1496, %v1496
    %v1625 = vpack.c.b16 %v1497, %v1497
    %v1626 = vpack.c.b16 %v1498, %v1498
    %v1627 = vpack.c.b16 %v1499, %v1499
    %v1628 = vpack.c.b16 %v1500, %v1500
    %v1629 = vpack.c.b16 %v1501, %v1501
    %v1630 = vpack.c.b16 %v1502, %v1502
    %v1631 = vpack.c.b16 %v1503, %v1503
    %v1632 = vpack.c.b16 %v1504, %v1504
    %v1633 = vpack.c.b16 %v1505, %v1505
    %v1634 = vpack.c.b16 %v1506, %v1506
    %v1635 = vpack.c.b16 %v1507, %v1507
    %v1636 = vpack.c.b16 %v1508, %v1508
    %v1637 = vpack.c.b16 %v1509, %v1509
    %v1638 = vpack.c.b16 %v1510, %v1510
    %v1639 = vpack.c.b16 %v1511, %v1511
    %v1640 = vpack.c.b16 %v1512, %v1512
    %v1641 = vpack.c.b16 %v1513, %v1513
    %v1642 = vpack.c.b16 %v1514, %v1514
    %v1643 = vpack.c.b16 %v1515, %v1515
    %v1644 = vpack.c.b16 %v1516, %v1516
    %v1645 = vpack.c.b16 %v1517, %v1517
    %v1646 = vpack.c.b16 %v1518, %v1518
    %v1647 = vpack.c.b16 %v1519, %v1519
    %v1648 = vpack.c.b16 %v1520, %v1520
    %v1649 = vpack.c.b16 %v1521, %v1521
    %v1650 = vpack.c.b16 %v1522, %v1522
    %v1651 = vpack.c.b16 %v1523, %v1523
    %v1652 = vpack.c.b16 %v1524, %v1524
    %v1653 = vpack.c.b16 %v1525, %v1525
    %v1654 = vpack.c.b16 %v1526, %v1526
    %v1655 = vpack.c.b16 %v1527, %v1527
    %v1656 = vpack.c.b16 %v1528, %v1528
    %v1657 = vpack.c.b16 %v1529, %v1529
    %v1658 = vpack.c.b16 %v1530, %v1530
    %v1659 = vpack.c.b16 %v1531, %v1531
    %v1660 = vpack.c.b16 %v1532, %v1532
    %v1661 = vpack.c.b16 %v1533, %v1533
    %v1662 = vpack.c.b16 %v1534, %v1534
    %v1663 = vpack.c.b16 %v1535, %v1535
    %v1664 = vpack.c.b16 %v1536, %v1536
    %v1665 = vpack.c.b16 %v1537, %v1537
    %v1666 = vpack.c.b16 %v1538, %v1538
    %v1667 = vpack.c.b16 %v1539, %v1539
    %v1668 = vpack.c.b16 %v1540, %v1540
    %v1669 = vpack.c.b16 %v1541, %v1541
    %v1670 = vpack.c.b16 %v1542, %v1542
    %v1671 = vpack.c.b16 %v1543, %v1543
    %v1672 = vpack.c.b16 %v1544, %v1544
    %v1673 = vpack.c.b16 %v1545, %v1545
    %v1674 = vpack.c.b16 %v1546, %v1546
    %v1675 = vpack.c.b16 %v1547, %v1547
    %v1676 = vpack.c.b16 %v1548, %v1548
    %v1677 = vpack.c.b16 %v1549, %v1549
    %v1678 = vpack.c.b16 %v1550, %v1550
    %v1679 = vpack.c.b16 %v1551, %v1551
    %v1680 = vpack.c.b16 %v1552, %v1552
    %v1681 = vpack.c.b16 %v1553, %v1553
    %v1682 = vpack.c.b16 %v1554, %v1554
    %v1683 = vpack.c.b16 %v1555, %v1555
    %v1684 = vpack.c.b16 %v1556, %v1556
    %v1685 = vpack.c.b16 %v1557, %v1557
    %v1686 = vpack.c.b16 %v1558, %v1558
    %v1687 = vpack.c.b16 %v1559, %v1559
    %v1688 = vpack.c.b16 %v1560, %v1560
    %v1689 = vpack.c.b16 %v1561, %v1561
    %v1690 = vpack.c.b16 %v1562, %v1562
    %v1691 = vpack.c.b16 %v1563, %v1563
    %v1692 = vpack.c.b16 %v1564, %v1564
    %v1693 = vpack.c.b16 %v1565, %v1565
    %v1694 = vpack.c.b16 %v1566, %v1566
    %v1695 = vpack.c.b16 %v1567, %v1567
    %v1696 = vpack.c.b16 %v1568, %v1568
    %v1697 = vpack.c.b16 %v1569, %v1569
    %v1698 = vpack.c.b16 %v1570, %v1570
    %v1699 = vpack.c.b16 %v1571, %v1571
    %v1700 = vpack.c.b16 %v1572, %v1572
    %v1701 = vpack.c.b16 %v1573, %v1573
    %v1702 = vpack.c.b16 %v1574, %v1574
    %v1703 = vpack.c.b16 %v1575, %v1575
    %v1704 = vpack.c.b16 %v1576, %v1576
    %v1705 = vpack.c.b16 %v1577, %v1577
    %v1706 = vpack.c.b16 %v1578, %v1578
    %v1707 = vpack.c.b16 %v1579, %v1579
    %v1708 = vpack.c.b16 %v1580, %v1580
    %v1709 = vpack.c.b16 %v1581, %v1581
    %v1710 = vpack.c.b16 %v1582, %v1582
    %v1711 = vpack.c.b16 %v1583, %v1583
    %1840 = vst [vmem:[#allocation7] sm:$0xf] %v1584
    %1841 = vst [vmem:[#allocation7 + $0x4] sm:$0xf] %v1585
    %1842 = vst [vmem:[#allocation7 + $0x8] sm:$0xf] %v1586
    %1843 = vst [vmem:[#allocation7 + $0xc] sm:$0xf] %v1587
    %1844 = vst [vmem:[#allocation7 + $0x10] sm:$0xf] %v1588
    %1845 = vst [vmem:[#allocation7 + $0x14] sm:$0xf] %v1589
    %1846 = vst [vmem:[#allocation7 + $0x18] sm:$0xf] %v1590
    %1847 = vst [vmem:[#allocation7 + $0x1c] sm:$0xf] %v1591
    %1848 = vst [vmem:[#allocation7 + $0x20] sm:$0xf] %v1592
    %1849 = vst [vmem:[#allocation7 + $0x24] sm:$0xf] %v1593
    %1850 = vst [vmem:[#allocation7 + $0x28] sm:$0xf] %v1594
    %1851 = vst [vmem:[#allocation7 + $0x2c] sm:$0xf] %v1595
    %1852 = vst [vmem:[#allocation7 + $0x30] sm:$0xf] %v1596
    %1853 = vst [vmem:[#allocation7 + $0x34] sm:$0xf] %v1597
    %1854 = vst [vmem:[#allocation7 + $0x38] sm:$0xf] %v1598
    %1855 = vst [vmem:[#allocation7 + $0x3c] sm:$0xf] %v1599
    %1856 = vst [vmem:[#allocation7 + $0x40] sm:$0xf] %v1600
    %1857 = vst [vmem:[#allocation7 + $0x44] sm:$0xf] %v1601
    %1858 = vst [vmem:[#allocation7 + $0x48] sm:$0xf] %v1602
    %1859 = vst [vmem:[#allocation7 + $0x4c] sm:$0xf] %v1603
    %1860 = vst [vmem:[#allocation7 + $0x50] sm:$0xf] %v1604
    %1861 = vst [vmem:[#allocation7 + $0x54] sm:$0xf] %v1605
    %1862 = vst [vmem:[#allocation7 + $0x58] sm:$0xf] %v1606
    %1863 = vst [vmem:[#allocation7 + $0x5c] sm:$0xf] %v1607
    %1864 = vst [vmem:[#allocation7 + $0x60] sm:$0xf] %v1608
    %1865 = vst [vmem:[#allocation7 + $0x64] sm:$0xf] %v1609
    %1866 = vst [vmem:[#allocation7 + $0x68] sm:$0xf] %v1610
    %1867 = vst [vmem:[#allocation7 + $0x6c] sm:$0xf] %v1611
    %1868 = vst [vmem:[#allocation7 + $0x70] sm:$0xf] %v1612
    %1869 = vst [vmem:[#allocation7 + $0x74] sm:$0xf] %v1613
    %1870 = vst [vmem:[#allocation7 + $0x78] sm:$0xf] %v1614
    %1871 = vst [vmem:[#allocation7 + $0x7c] sm:$0xf] %v1615
    %1872 = vst [vmem:[#allocation7 + $0x80] sm:$0xf] %v1616
    %1873 = vst [vmem:[#allocation7 + $0x84] sm:$0xf] %v1617
    %1874 = vst [vmem:[#allocation7 + $0x88] sm:$0xf] %v1618
    %1875 = vst [vmem:[#allocation7 + $0x8c] sm:$0xf] %v1619
    %1876 = vst [vmem:[#allocation7 + $0x90] sm:$0xf] %v1620
    %1877 = vst [vmem:[#allocation7 + $0x94] sm:$0xf] %v1621
    %1878 = vst [vmem:[#allocation7 + $0x98] sm:$0xf] %v1622
    %1879 = vst [vmem:[#allocation7 + $0x9c] sm:$0xf] %v1623
    %1880 = vst [vmem:[#allocation7 + $0xa0] sm:$0xf] %v1624
    %1881 = vst [vmem:[#allocation7 + $0xa4] sm:$0xf] %v1625
    %1882 = vst [vmem:[#allocation7 + $0xa8] sm:$0xf] %v1626
    %1883 = vst [vmem:[#allocation7 + $0xac] sm:$0xf] %v1627
    %1884 = vst [vmem:[#allocation7 + $0xb0] sm:$0xf] %v1628
    %1885 = vst [vmem:[#allocation7 + $0xb4] sm:$0xf] %v1629
    %1886 = vst [vmem:[#allocation7 + $0xb8] sm:$0xf] %v1630
    %1887 = vst [vmem:[#allocation7 + $0xbc] sm:$0xf] %v1631
    %1888 = vst [vmem:[#allocation7 + $0xc0] sm:$0xf] %v1632
    %1889 = vst [vmem:[#allocation7 + $0xc4] sm:$0xf] %v1633
    %1890 = vst [vmem:[#allocation7 + $0xc8] sm:$0xf] %v1634
    %1891 = vst [vmem:[#allocation7 + $0xcc] sm:$0xf] %v1635
    %1892 = vst [vmem:[#allocation7 + $0xd0] sm:$0xf] %v1636
    %1893 = vst [vmem:[#allocation7 + $0xd4] sm:$0xf] %v1637
    %1894 = vst [vmem:[#allocation7 + $0xd8] sm:$0xf] %v1638
    %1895 = vst [vmem:[#allocation7 + $0xdc] sm:$0xf] %v1639
    %1896 = vst [vmem:[#allocation7 + $0xe0] sm:$0xf] %v1640
    %1897 = vst [vmem:[#allocation7 + $0xe4] sm:$0xf] %v1641
    %1898 = vst [vmem:[#allocation7 + $0xe8] sm:$0xf] %v1642
    %1899 = vst [vmem:[#allocation7 + $0xec] sm:$0xf] %v1643
    %1900 = vst [vmem:[#allocation7 + $0xf0] sm:$0xf] %v1644
    %1901 = vst [vmem:[#allocation7 + $0xf4] sm:$0xf] %v1645
    %1902 = vst [vmem:[#allocation7 + $0xf8] sm:$0xf] %v1646
    %1903 = vst [vmem:[#allocation7 + $0xfc] sm:$0xf] %v1647
    %1904 = vst [vmem:[#allocation7 + $0x100] sm:$0xf] %v1648
    %1905 = vst [vmem:[#allocation7 + $0x104] sm:$0xf] %v1649
    %1906 = vst [vmem:[#allocation7 + $0x108] sm:$0xf] %v1650
    %1907 = vst [vmem:[#allocation7 + $0x10c] sm:$0xf] %v1651
    %1908 = vst [vmem:[#allocation7 + $0x110] sm:$0xf] %v1652
    %1909 = vst [vmem:[#allocation7 + $0x114] sm:$0xf] %v1653
    %1910 = vst [vmem:[#allocation7 + $0x118] sm:$0xf] %v1654
    %1911 = vst [vmem:[#allocation7 + $0x11c] sm:$0xf] %v1655
    %1912 = vst [vmem:[#allocation7 + $0x120] sm:$0xf] %v1656
    %1913 = vst [vmem:[#allocation7 + $0x124] sm:$0xf] %v1657
    %1914 = vst [vmem:[#allocation7 + $0x128] sm:$0xf] %v1658
    %1915 = vst [vmem:[#allocation7 + $0x12c] sm:$0xf] %v1659
    %1916 = vst [vmem:[#allocation7 + $0x130] sm:$0xf] %v1660
    %1917 = vst [vmem:[#allocation7 + $0x134] sm:$0xf] %v1661
    %1918 = vst [vmem:[#allocation7 + $0x138] sm:$0xf] %v1662
    %1919 = vst [vmem:[#allocation7 + $0x13c] sm:$0xf] %v1663
    %1920 = vst [vmem:[#allocation7 + $0x140] sm:$0xf] %v1664
    %1921 = vst [vmem:[#allocation7 + $0x144] sm:$0xf] %v1665
    %1922 = vst [vmem:[#allocation7 + $0x148] sm:$0xf] %v1666
    %1923 = vst [vmem:[#allocation7 + $0x14c] sm:$0xf] %v1667
    %1924 = vst [vmem:[#allocation7 + $0x150] sm:$0xf] %v1668
    %1925 = vst [vmem:[#allocation7 + $0x154] sm:$0xf] %v1669
    %1926 = vst [vmem:[#allocation7 + $0x158] sm:$0xf] %v1670
    %1927 = vst [vmem:[#allocation7 + $0x15c] sm:$0xf] %v1671
    %1928 = vst [vmem:[#allocation7 + $0x160] sm:$0xf] %v1672
    %1929 = vst [vmem:[#allocation7 + $0x164] sm:$0xf] %v1673
    %1930 = vst [vmem:[#allocation7 + $0x168] sm:$0xf] %v1674
    %1931 = vst [vmem:[#allocation7 + $0x16c] sm:$0xf] %v1675
    %1932 = vst [vmem:[#allocation7 + $0x170] sm:$0xf] %v1676
    %1933 = vst [vmem:[#allocation7 + $0x174] sm:$0xf] %v1677
    %1934 = vst [vmem:[#allocation7 + $0x178] sm:$0xf] %v1678
    %1935 = vst [vmem:[#allocation7 + $0x17c] sm:$0xf] %v1679
    %1936 = vst [vmem:[#allocation7 + $0x180] sm:$0xf] %v1680
    %1937 = vst [vmem:[#allocation7 + $0x184] sm:$0xf] %v1681
    %1938 = vst [vmem:[#allocation7 + $0x188] sm:$0xf] %v1682
    %1939 = vst [vmem:[#allocation7 + $0x18c] sm:$0xf] %v1683
    %1940 = vst [vmem:[#allocation7 + $0x190] sm:$0xf] %v1684
    %1941 = vst [vmem:[#allocation7 + $0x194] sm:$0xf] %v1685
    %1942 = vst [vmem:[#allocation7 + $0x198] sm:$0xf] %v1686
    %1943 = vst [vmem:[#allocation7 + $0x19c] sm:$0xf] %v1687
    %1944 = vst [vmem:[#allocation7 + $0x1a0] sm:$0xf] %v1688
    %1945 = vst [vmem:[#allocation7 + $0x1a4] sm:$0xf] %v1689
    %1946 = vst [vmem:[#allocation7 + $0x1a8] sm:$0xf] %v1690
    %1947 = vst [vmem:[#allocation7 + $0x1ac] sm:$0xf] %v1691
    %1948 = vst [vmem:[#allocation7 + $0x1b0] sm:$0xf] %v1692
    %1949 = vst [vmem:[#allocation7 + $0x1b4] sm:$0xf] %v1693
    %1950 = vst [vmem:[#allocation7 + $0x1b8] sm:$0xf] %v1694
    %1951 = vst [vmem:[#allocation7 + $0x1bc] sm:$0xf] %v1695
    %1952 = vst [vmem:[#allocation7 + $0x1c0] sm:$0xf] %v1696
    %1953 = vst [vmem:[#allocation7 + $0x1c4] sm:$0xf] %v1697
    %1954 = vst [vmem:[#allocation7 + $0x1c8] sm:$0xf] %v1698
    %1955 = vst [vmem:[#allocation7 + $0x1cc] sm:$0xf] %v1699
    %1956 = vst [vmem:[#allocation7 + $0x1d0] sm:$0xf] %v1700
    %1957 = vst [vmem:[#allocation7 + $0x1d4] sm:$0xf] %v1701
    %1958 = vst [vmem:[#allocation7 + $0x1d8] sm:$0xf] %v1702
    %1959 = vst [vmem:[#allocation7 + $0x1dc] sm:$0xf] %v1703
    %1960 = vst [vmem:[#allocation7 + $0x1e0] sm:$0xf] %v1704
    %1961 = vst [vmem:[#allocation7 + $0x1e4] sm:$0xf] %v1705
    %1962 = vst [vmem:[#allocation7 + $0x1e8] sm:$0xf] %v1706
    %1963 = vst [vmem:[#allocation7 + $0x1ec] sm:$0xf] %v1707
    %1964 = vst [vmem:[#allocation7 + $0x1f0] sm:$0xf] %v1708
    %1965 = vst [vmem:[#allocation7 + $0x1f4] sm:$0xf] %v1709
    %1966 = vst [vmem:[#allocation7 + $0x1f8] sm:$0xf] %v1710
    %1967 = vst [vmem:[#allocation7 + $0x1fc] sm:$0xf] %v1711
    %v1968 = vld [vmem:[%s2] sm:$0x1]
    %v1970 = vlaneseq
    %v1971 = vshrl.u32 %v1970, 7
    %v1972 = vsub.s32 0, %v1971
    %v1973 = vrot.slane %v1968, %v1972
    %v1975 = vadd.f32 %v692, %v1973
    %v1976 = vadd.f32 %v696, %v1973
    %v1977 = vadd.f32 %v702, %v1973
    %v1978 = vadd.f32 %v706, %v1973
    %v1979 = vadd.f32 %v712, %v1973
    %v1980 = vadd.f32 %v716, %v1973
    %v1981 = vadd.f32 %v722, %v1973
    %v1982 = vadd.f32 %v726, %v1973
    %v1983 = vadd.f32 %v732, %v1973
    %v1984 = vadd.f32 %v736, %v1973
    %v1985 = vadd.f32 %v742, %v1973
    %v1986 = vadd.f32 %v746, %v1973
    %v1987 = vadd.f32 %v752, %v1973
    %v1988 = vadd.f32 %v756, %v1973
    %v1989 = vadd.f32 %v762, %v1973
    %v1990 = vadd.f32 %v766, %v1973
    %v1991 = vadd.f32 %v772, %v1973
    %v1992 = vadd.f32 %v776, %v1973
    %v1993 = vadd.f32 %v782, %v1973
    %v1994 = vadd.f32 %v786, %v1973
    %v1995 = vadd.f32 %v792, %v1973
    %v1996 = vadd.f32 %v796, %v1973
    %v1997 = vadd.f32 %v802, %v1973
    %v1998 = vadd.f32 %v806, %v1973
    %v1999 = vadd.f32 %v812, %v1973
    %v2000 = vadd.f32 %v816, %v1973
    %v2001 = vadd.f32 %v822, %v1973
    %v2002 = vadd.f32 %v826, %v1973
    %v2003 = vadd.f32 %v832, %v1973
    %v2004 = vadd.f32 %v836, %v1973
    %v2005 = vadd.f32 %v842, %v1973
    %v2006 = vadd.f32 %v846, %v1973
    %v2007 = vadd.f32 %v852, %v1973
    %v2008 = vadd.f32 %v856, %v1973
    %v2009 = vadd.f32 %v862, %v1973
    %v2010 = vadd.f32 %v866, %v1973
    %v2011 = vadd.f32 %v872, %v1973
    %v2012 = vadd.f32 %v876, %v1973
    %v2013 = vadd.f32 %v882, %v1973
    %v2014 = vadd.f32 %v886, %v1973
    %v2015 = vadd.f32 %v892, %v1973
    %v2016 = vadd.f32 %v896, %v1973
    %v2017 = vadd.f32 %v902, %v1973
    %v2018 = vadd.f32 %v906, %v1973
    %v2019 = vadd.f32 %v912, %v1973
    %v2020 = vadd.f32 %v916, %v1973
    %v2021 = vadd.f32 %v922, %v1973
    %v2022 = vadd.f32 %v926, %v1973
    %v2023 = vadd.f32 %v932, %v1973
    %v2024 = vadd.f32 %v936, %v1973
    %v2025 = vadd.f32 %v942, %v1973
    %v2026 = vadd.f32 %v946, %v1973
    %v2027 = vadd.f32 %v952, %v1973
    %v2028 = vadd.f32 %v956, %v1973
    %v2029 = vadd.f32 %v962, %v1973
    %v2030 = vadd.f32 %v966, %v1973
    %v2031 = vadd.f32 %v972, %v1973
    %v2032 = vadd.f32 %v976, %v1973
    %v2033 = vadd.f32 %v982, %v1973
    %v2034 = vadd.f32 %v986, %v1973
    %v2035 = vadd.f32 %v992, %v1973
    %v2036 = vadd.f32 %v996, %v1973
    %v2037 = vadd.f32 %v1002, %v1973
    %v2038 = vadd.f32 %v1006, %v1973
    %v2039 = vadd.f32 %v1012, %v1973
    %v2040 = vadd.f32 %v1016, %v1973
    %v2041 = vadd.f32 %v1022, %v1973
    %v2042 = vadd.f32 %v1026, %v1973
    %v2043 = vadd.f32 %v1032, %v1973
    %v2044 = vadd.f32 %v1036, %v1973
    %v2045 = vadd.f32 %v1042, %v1973
    %v2046 = vadd.f32 %v1046, %v1973
    %v2047 = vadd.f32 %v1052, %v1973
    %v2048 = vadd.f32 %v1056, %v1973
    %v2049 = vadd.f32 %v1062, %v1973
    %v2050 = vadd.f32 %v1066, %v1973
    %v2051 = vadd.f32 %v1072, %v1973
    %v2052 = vadd.f32 %v1076, %v1973
    %v2053 = vadd.f32 %v1082, %v1973
    %v2054 = vadd.f32 %v1086, %v1973
    %v2055 = vadd.f32 %v1092, %v1973
    %v2056 = vadd.f32 %v1096, %v1973
    %v2057 = vadd.f32 %v1102, %v1973
    %v2058 = vadd.f32 %v1106, %v1973
    %v2059 = vadd.f32 %v1112, %v1973
    %v2060 = vadd.f32 %v1116, %v1973
    %v2061 = vadd.f32 %v1122, %v1973
    %v2062 = vadd.f32 %v1126, %v1973
    %v2063 = vadd.f32 %v1132, %v1973
    %v2064 = vadd.f32 %v1136, %v1973
    %v2065 = vadd.f32 %v1142, %v1973
    %v2066 = vadd.f32 %v1146, %v1973
    %v2067 = vadd.f32 %v1152, %v1973
    %v2068 = vadd.f32 %v1156, %v1973
    %v2069 = vadd.f32 %v1162, %v1973
    %v2070 = vadd.f32 %v1166, %v1973
    %v2071 = vadd.f32 %v1172, %v1973
    %v2072 = vadd.f32 %v1176, %v1973
    %v2073 = vadd.f32 %v1182, %v1973
    %v2074 = vadd.f32 %v1186, %v1973
    %v2075 = vadd.f32 %v1192, %v1973
    %v2076 = vadd.f32 %v1196, %v1973
    %v2077 = vadd.f32 %v1202, %v1973
    %v2078 = vadd.f32 %v1206, %v1973
    %v2079 = vadd.f32 %v1212, %v1973
    %v2080 = vadd.f32 %v1216, %v1973
    %v2081 = vadd.f32 %v1222, %v1973
    %v2082 = vadd.f32 %v1226, %v1973
    %v2083 = vadd.f32 %v1232, %v1973
    %v2084 = vadd.f32 %v1236, %v1973
    %v2085 = vadd.f32 %v1242, %v1973
    %v2086 = vadd.f32 %v1246, %v1973
    %v2087 = vadd.f32 %v1252, %v1973
    %v2088 = vadd.f32 %v1256, %v1973
    %v2089 = vadd.f32 %v1262, %v1973
    %v2090 = vadd.f32 %v1266, %v1973
    %v2091 = vadd.f32 %v1272, %v1973
    %v2092 = vadd.f32 %v1276, %v1973
    %v2093 = vadd.f32 %v1282, %v1973
    %v2094 = vadd.f32 %v1286, %v1973
    %v2095 = vadd.f32 %v1292, %v1973
    %v2096 = vadd.f32 %v1296, %v1973
    %v2097 = vadd.f32 %v1302, %v1973
    %v2098 = vadd.f32 %v1306, %v1973
    %v2099 = vadd.f32 %v1312, %v1973
    %v2100 = vadd.f32 %v1316, %v1973
    %v2101 = vadd.f32 %v1322, %v1973
    %v2102 = vadd.f32 %v1326, %v1973
    %2103 = vst [vmem:[#allocation8] sm:$0xff] %v1975
    %2104 = vst [vmem:[#allocation8 + $0x8] sm:$0xff] %v1976
    %2105 = vst [vmem:[#allocation8 + $0x10] sm:$0xff] %v1977
    %2106 = vst [vmem:[#allocation8 + $0x18] sm:$0xff] %v1978
    %2107 = vst [vmem:[#allocation8 + $0x20] sm:$0xff] %v1979
    %2108 = vst [vmem:[#allocation8 + $0x28] sm:$0xff] %v1980
    %2109 = vst [vmem:[#allocation8 + $0x30] sm:$0xff] %v1981
    %2110 = vst [vmem:[#allocation8 + $0x38] sm:$0xff] %v1982
    %2111 = vst [vmem:[#allocation8 + $0x40] sm:$0xff] %v1983
    %2112 = vst [vmem:[#allocation8 + $0x48] sm:$0xff] %v1984
    %2113 = vst [vmem:[#allocation8 + $0x50] sm:$0xff] %v1985
    %2114 = vst [vmem:[#allocation8 + $0x58] sm:$0xff] %v1986
    %2115 = vst [vmem:[#allocation8 + $0x60] sm:$0xff] %v1987
    %2116 = vst [vmem:[#allocation8 + $0x68] sm:$0xff] %v1988
    %2117 = vst [vmem:[#allocation8 + $0x70] sm:$0xff] %v1989
    %2118 = vst [vmem:[#allocation8 + $0x78] sm:$0xff] %v1990
    %2119 = vst [vmem:[#allocation8 + $0x80] sm:$0xff] %v1991
    %2120 = vst [vmem:[#allocation8 + $0x88] sm:$0xff] %v1992
    %2121 = vst [vmem:[#allocation8 + $0x90] sm:$0xff] %v1993
    %2122 = vst [vmem:[#allocation8 + $0x98] sm:$0xff] %v1994
    %2123 = vst [vmem:[#allocation8 + $0xa0] sm:$0xff] %v1995
    %2124 = vst [vmem:[#allocation8 + $0xa8] sm:$0xff] %v1996
    %2125 = vst [vmem:[#allocation8 + $0xb0] sm:$0xff] %v1997
    %2126 = vst [vmem:[#allocation8 + $0xb8] sm:$0xff] %v1998
    %2127 = vst [vmem:[#allocation8 + $0xc0] sm:$0xff] %v1999
    %2128 = vst [vmem:[#allocation8 + $0xc8] sm:$0xff] %v2000
    %2129 = vst [vmem:[#allocation8 + $0xd0] sm:$0xff] %v2001
    %2130 = vst [vmem:[#allocation8 + $0xd8] sm:$0xff] %v2002
    %2131 = vst [vmem:[#allocation8 + $0xe0] sm:$0xff] %v2003
    %2132 = vst [vmem:[#allocation8 + $0xe8] sm:$0xff] %v2004
    %2133 = vst [vmem:[#allocation8 + $0xf0] sm:$0xff] %v2005
    %2134 = vst [vmem:[#allocation8 + $0xf8] sm:$0xff] %v2006
    %2135 = vst [vmem:[#allocation8 + $0x100] sm:$0xff] %v2007
    %2136 = vst [vmem:[#allocation8 + $0x108] sm:$0xff] %v2008
    %2137 = vst [vmem:[#allocation8 + $0x110] sm:$0xff] %v2009
    %2138 = vst [vmem:[#allocation8 + $0x118] sm:$0xff] %v2010
    %2139 = vst [vmem:[#allocation8 + $0x120] sm:$0xff] %v2011
    %2140 = vst [vmem:[#allocation8 + $0x128] sm:$0xff] %v2012
    %2141 = vst [vmem:[#allocation8 + $0x130] sm:$0xff] %v2013
    %2142 = vst [vmem:[#allocation8 + $0x138] sm:$0xff] %v2014
    %2143 = vst [vmem:[#allocation8 + $0x140] sm:$0xff] %v2015
    %2144 = vst [vmem:[#allocation8 + $0x148] sm:$0xff] %v2016
    %2145 = vst [vmem:[#allocation8 + $0x150] sm:$0xff] %v2017
    %2146 = vst [vmem:[#allocation8 + $0x158] sm:$0xff] %v2018
    %2147 = vst [vmem:[#allocation8 + $0x160] sm:$0xff] %v2019
    %2148 = vst [vmem:[#allocation8 + $0x168] sm:$0xff] %v2020
    %2149 = vst [vmem:[#allocation8 + $0x170] sm:$0xff] %v2021
    %2150 = vst [vmem:[#allocation8 + $0x178] sm:$0xff] %v2022
    %2151 = vst [vmem:[#allocation8 + $0x180] sm:$0xff] %v2023
    %2152 = vst [vmem:[#allocation8 + $0x188] sm:$0xff] %v2024
    %2153 = vst [vmem:[#allocation8 + $0x190] sm:$0xff] %v2025
    %2154 = vst [vmem:[#allocation8 + $0x198] sm:$0xff] %v2026
    %2155 = vst [vmem:[#allocation8 + $0x1a0] sm:$0xff] %v2027
    %2156 = vst [vmem:[#allocation8 + $0x1a8] sm:$0xff] %v2028
    %2157 = vst [vmem:[#allocation8 + $0x1b0] sm:$0xff] %v2029
    %2158 = vst [vmem:[#allocation8 + $0x1b8] sm:$0xff] %v2030
    %2159 = vst [vmem:[#allocation8 + $0x1c0] sm:$0xff] %v2031
    %2160 = vst [vmem:[#allocation8 + $0x1c8] sm:$0xff] %v2032
    %2161 = vst [vmem:[#allocation8 + $0x1d0] sm:$0xff] %v2033
    %2162 = vst [vmem:[#allocation8 + $0x1d8] sm:$0xff] %v2034
    %2163 = vst [vmem:[#allocation8 + $0x1e0] sm:$0xff] %v2035
    %2164 = vst [vmem:[#allocation8 + $0x1e8] sm:$0xff] %v2036
    %2165 = vst [vmem:[#allocation8 + $0x1f0] sm:$0xff] %v2037
    %2166 = vst [vmem:[#allocation8 + $0x1f8] sm:$0xff] %v2038
    %2167 = vst [vmem:[#allocation8 + $0x200] sm:$0xff] %v2039
    %2168 = vst [vmem:[#allocation8 + $0x208] sm:$0xff] %v2040
    %2169 = vst [vmem:[#allocation8 + $0x210] sm:$0xff] %v2041
    %2170 = vst [vmem:[#allocation8 + $0x218] sm:$0xff] %v2042
    %2171 = vst [vmem:[#allocation8 + $0x220] sm:$0xff] %v2043
    %2172 = vst [vmem:[#allocation8 + $0x228] sm:$0xff] %v2044
    %2173 = vst [vmem:[#allocation8 + $0x230] sm:$0xff] %v2045
    %2174 = vst [vmem:[#allocation8 + $0x238] sm:$0xff] %v2046
    %2175 = vst [vmem:[#allocation8 + $0x240] sm:$0xff] %v2047
    %2176 = vst [vmem:[#allocation8 + $0x248] sm:$0xff] %v2048
    %2177 = vst [vmem:[#allocation8 + $0x250] sm:$0xff] %v2049
    %2178 = vst [vmem:[#allocation8 + $0x258] sm:$0xff] %v2050
    %2179 = vst [vmem:[#allocation8 + $0x260] sm:$0xff] %v2051
    %2180 = vst [vmem:[#allocation8 + $0x268] sm:$0xff] %v2052
    %2181 = vst [vmem:[#allocation8 + $0x270] sm:$0xff] %v2053
    %2182 = vst [vmem:[#allocation8 + $0x278] sm:$0xff] %v2054
    %2183 = vst [vmem:[#allocation8 + $0x280] sm:$0xff] %v2055
    %2184 = vst [vmem:[#allocation8 + $0x288] sm:$0xff] %v2056
    %2185 = vst [vmem:[#allocation8 + $0x290] sm:$0xff] %v2057
    %2186 = vst [vmem:[#allocation8 + $0x298] sm:$0xff] %v2058
    %2187 = vst [vmem:[#allocation8 + $0x2a0] sm:$0xff] %v2059
    %2188 = vst [vmem:[#allocation8 + $0x2a8] sm:$0xff] %v2060
    %2189 = vst [vmem:[#allocation8 + $0x2b0] sm:$0xff] %v2061
    %2190 = vst [vmem:[#allocation8 + $0x2b8] sm:$0xff] %v2062
    %2191 = vst [vmem:[#allocation8 + $0x2c0] sm:$0xff] %v2063
    %2192 = vst [vmem:[#allocation8 + $0x2c8] sm:$0xff] %v2064
    %2193 = vst [vmem:[#allocation8 + $0x2d0] sm:$0xff] %v2065
    %2194 = vst [vmem:[#allocation8 + $0x2d8] sm:$0xff] %v2066
    %2195 = vst [vmem:[#allocation8 + $0x2e0] sm:$0xff] %v2067
    %2196 = vst [vmem:[#allocation8 + $0x2e8] sm:$0xff] %v2068
    %2197 = vst [vmem:[#allocation8 + $0x2f0] sm:$0xff] %v2069
    %2198 = vst [vmem:[#allocation8 + $0x2f8] sm:$0xff] %v2070
    %2199 = vst [vmem:[#allocation8 + $0x300] sm:$0xff] %v2071
    %2200 = vst [vmem:[#allocation8 + $0x308] sm:$0xff] %v2072
    %2201 = vst [vmem:[#allocation8 + $0x310] sm:$0xff] %v2073
    %2202 = vst [vmem:[#allocation8 + $0x318] sm:$0xff] %v2074
    %2203 = vst [vmem:[#allocation8 + $0x320] sm:$0xff] %v2075
    %2204 = vst [vmem:[#allocation8 + $0x328] sm:$0xff] %v2076
    %2205 = vst [vmem:[#allocation8 + $0x330] sm:$0xff] %v2077
    %2206 = vst [vmem:[#allocation8 + $0x338] sm:$0xff] %v2078
    %2207 = vst [vmem:[#allocation8 + $0x340] sm:$0xff] %v2079
    %2208 = vst [vmem:[#allocation8 + $0x348] sm:$0xff] %v2080
    %2209 = vst [vmem:[#allocation8 + $0x350] sm:$0xff] %v2081
    %2210 = vst [vmem:[#allocation8 + $0x358] sm:$0xff] %v2082
    %2211 = vst [vmem:[#allocation8 + $0x360] sm:$0xff] %v2083
    %2212 = vst [vmem:[#allocation8 + $0x368] sm:$0xff] %v2084
    %2213 = vst [vmem:[#allocation8 + $0x370] sm:$0xff] %v2085
    %2214 = vst [vmem:[#allocation8 + $0x378] sm:$0xff] %v2086
    %2215 = vst [vmem:[#allocation8 + $0x380] sm:$0xff] %v2087
    %2216 = vst [vmem:[#allocation8 + $0x388] sm:$0xff] %v2088
    %2217 = vst [vmem:[#allocation8 + $0x390] sm:$0xff] %v2089
    %2218 = vst [vmem:[#allocation8 + $0x398] sm:$0xff] %v2090
    %2219 = vst [vmem:[#allocation8 + $0x3a0] sm:$0xff] %v2091
    %2220 = vst [vmem:[#allocation8 + $0x3a8] sm:$0xff] %v2092
    %2221 = vst [vmem:[#allocation8 + $0x3b0] sm:$0xff] %v2093
    %2222 = vst [vmem:[#allocation8 + $0x3b8] sm:$0xff] %v2094
    %2223 = vst [vmem:[#allocation8 + $0x3c0] sm:$0xff] %v2095
    %2224 = vst [vmem:[#allocation8 + $0x3c8] sm:$0xff] %v2096
    %2225 = vst [vmem:[#allocation8 + $0x3d0] sm:$0xff] %v2097
    %2226 = vst [vmem:[#allocation8 + $0x3d8] sm:$0xff] %v2098
    %2227 = vst [vmem:[#allocation8 + $0x3e0] sm:$0xff] %v2099
    %2228 = vst [vmem:[#allocation8 + $0x3e8] sm:$0xff] %v2100
    %2229 = vst [vmem:[#allocation8 + $0x3f0] sm:$0xff] %v2101
    %2230 = vst [vmem:[#allocation8 + $0x3f8] sm:$0xff] %v2102
    // Predicated region
    $region22: #{tpu_custom_call.1} parent=1 // pred_check
      _
    $region23: #{tpu_custom_call.1} parent=1 // pred_check_branch
      %2232 = sbr.rel (0) target = $region25
    $region24: #{tpu_custom_call.1} parent=1 // pred_region
      %s2234 = ssub.s32 8192, 8192
      %2235 = vsyncadd [#allocation4], %s2234
      %s2236 = sshll.u32 [#allocation7], 4
      %s2237 = int_to_ptr.vmem [resolvable:$true] %s2236
      %2242 = dma.vmem_to_hbm [thread:$0]  %s2237, 8192, %s3, [#allocation4], 64, 64, 4
    $region25: #{tpu_custom_call.1} parent=1 // pred_fallthru
      _
    // Predicated region
    $region26: #{tpu_custom_call.1} parent=1 // pred_check
      _
    $region27: #{tpu_custom_call.1} parent=1 // pred_check_branch
      %2244 = sbr.rel (0) target = $region29
    $region28: #{tpu_custom_call.1} parent=1 // pred_region
      %s2246 = ssub.s32 16384, 16384
      %2247 = vsyncadd [#allocation9], %s2246
      %s2248 = sshll.u32 [#allocation8], 4
      %s2249 = int_to_ptr.vmem [resolvable:$true] %s2248
      %2254 = dma.vmem_to_hbm [thread:$0]  %s2249, 16384, %s4, [#allocation9], 128, 128, 8
    $region29: #{tpu_custom_call.1} parent=1 // pred_fallthru
      _
    // Predicated region
    $region30: #{tpu_custom_call.1} parent=1 // pred_check
      _
    $region31: #{tpu_custom_call.1} parent=1 // pred_check_branch
      %2256 = sbr.rel (0) target = $region33
    $region32: #{tpu_custom_call.1} parent=1 // pred_region
      %2257 = dma.done [#allocation4], 8192
    $region33: #{tpu_custom_call.1} parent=1 // pred_fallthru
      _
    // Predicated region
    $region34: #{tpu_custom_call.1} parent=1 // pred_check
      _
    $region35: #{tpu_custom_call.1} parent=1 // pred_check_branch
      %2259 = sbr.rel (0) target = $region37
    $region36: #{tpu_custom_call.1} parent=1 // pred_region
      %2260 = dma.done [#allocation9], 16384
    $region37: #{tpu_custom_call.1} parent=1 // pred_fallthru
      _
    %2261 = vsyncpa [#allocation3], 1
    %2262 = vsyncpa [#allocation6], 1
    %2263 = vsyncpa [#allocation4], 1
    %2264 = vsyncpa [#allocation9], 1

</llo_original>
